<compile_context>
chip_gen: v7x
topology: tpu7x:2x2x1
jax: 0.10.0
libtpu: 0.0.40
codegen_flags: <defaults>
</compile_context>

<pallas_src>
import jax
import jax.numpy as jnp
import numpy as np
from jax.experimental import pallas as pl
from jax.experimental.pallas import tpu as pltpu


def _cross_attn_kernel(x1_ref, x2_ref,
                       ws_ref, bs_ref,
                       wv_ref, bv_ref,
                       o_ref,
                       m_ref, l_ref, acc_ref, qc_ref):
    """Grid = (batch, q_tiles, kv_tiles); kv is the (arbitrary) reduction axis.

    x1_ref: (tq, C) f32   query-side tokens (also the residual)
    x2_ref: (tk, C) bf16  key/value-side tokens
    ws_ref: (C, C) bf16   folded score weight  W_s = Wq^T . Wk
    bs_ref: (1, C) f32    folded score bias    b_s = bq . Wk
    wv_ref: (C, C) bf16   value weight (already transposed to (in, out))
    bv_ref: (1, C) f32    value bias
    o_ref : (tq, C)       written only on the last kv step
    m/l/acc: online-softmax running state (f32 VMEM scratch, persists over kv)
    qc_ref : (tq, C) bf16 cached folded query projection (persists over kv)
    """
    ki = pl.program_id(2)

    @pl.when(ki == 0)
    def _init():
        m_ref[...] = jnp.full(m_ref.shape, -jnp.inf, m_ref.dtype)
        l_ref[...] = jnp.zeros(l_ref.shape, l_ref.dtype)
        acc_ref[...] = jnp.zeros(acc_ref.shape, acc_ref.dtype)
        # Folded query projection, computed once per (b, qi) and cached in VMEM.
        qp = jnp.dot(x1_ref[...].astype(jnp.bfloat16), ws_ref[...],
                     preferred_element_type=jnp.float32) + bs_ref[...]     # (tq, C)
        qc_ref[...] = qp.astype(jnp.bfloat16)

    x2 = x2_ref[...]                                                       # (tk, C) bf16

    # Scores: s[i, j] = q'_i . x2_j — contract over the full C (MXU-friendly),
    # no explicit transpose of the kv tile.
    s = jax.lax.dot_general(
        qc_ref[...], x2,
        dimension_numbers=(((1,), (1,)), ((), ())),
        preferred_element_type=jnp.float32)                                # (tq, tk)

    # Value projection for this kv tile (1x1 conv == per-token linear).
    v = jnp.dot(x2, wv_ref[...],
                preferred_element_type=jnp.float32) + bv_ref[...]          # (tk, C)

    # Online softmax over the kv axis; elementwise math stays in f32.
    m_prev = m_ref[...]                                                    # (tq, 1)
    m_new = jnp.maximum(m_prev, jnp.max(s, axis=-1, keepdims=True))
    alpha = jnp.exp(m_prev - m_new)                                        # (tq, 1)
    p = jnp.exp(s - m_new)                                                 # (tq, tk)
    l_ref[...] = alpha * l_ref[...] + jnp.sum(p, axis=-1, keepdims=True)
    acc_ref[...] = alpha * acc_ref[...] + jnp.dot(
        p.astype(jnp.bfloat16), v.astype(jnp.bfloat16),
        preferred_element_type=jnp.float32)                                # (tq, C)
    m_ref[...] = m_new

    @pl.when(ki == pl.num_programs(2) - 1)
    def _finalize():
        inv_l = pl.reciprocal(l_ref[...], approx=True)                     # EUP vrcp
        o_ref[...] = (x1_ref[...] + acc_ref[...] * inv_l).astype(o_ref.dtype)


def _pick_tile(n, preferred):
    """Largest tile <= preferred that divides n and is sublane-aligned, else full n."""
    t = min(preferred, n)
    while t >= 8:
        if n % t == 0 and t % 8 == 0:
            return t
        t //= 2
    return n


def _vmem_limit_bytes():
    """Generation-aware scoped-VMEM limit: generous on 128 MiB parts, capped on v7x."""
    try:
        phys = int(pltpu.get_tpu_info().vmem_capacity_bytes)
    except Exception:
        phys = 64 * 1024 * 1024          # conservative fallback (v7x-sized)
    return min(96 * 1024 * 1024, (3 * phys) // 4)


def cross_attention_pallas(x1, x2, params, *, q_tile=512, kv_tile=1024):
    """x1, x2: (B, C, H, W) NCHW float32.  Returns (B, C, H, W) float32."""
    B, C, H, W = x1.shape
    N = H * W
    Cq = C // 8
    hi = jax.lax.Precision.HIGHEST

    tq = _pick_tile(N, q_tile)
    tk = _pick_tile(N, kv_tile)
    nq = N // tq
    nk = N // tk

    # NCHW -> token-major (B, N, C).  x1 stays f32 (exact residual); x2 goes to
    # bf16 so its (re-)streamed HBM traffic is halved.
    x1_tok = jnp.transpose(x1.reshape(B, C, N), (0, 2, 1))
    x2_tok = jnp.transpose(x2.reshape(B, C, N), (0, 2, 1)).astype(jnp.bfloat16)

    # Conv2d 1x1 weights (out, in, 1, 1) -> matmul weights.
    wq = params["wq"].reshape(Cq, C).astype(jnp.float32)
    wk = params["wk"].reshape(Cq, C).astype(jnp.float32)
    wv = params["wv"].reshape(C, C).astype(jnp.float32)
    bq = params["bq"].reshape(Cq).astype(jnp.float32)
    bv = params["bv"].reshape(1, C).astype(jnp.float32)
    # bk is dropped: per-row score terms it contributes cancel in softmax.

    # Fold Wq/Wk into a single C x C score weight (f32 math, then bf16).
    ws = jnp.dot(wq.T, wk, precision=hi).astype(jnp.bfloat16)              # (C, C)
    bs = jnp.dot(bq[None, :], wk, precision=hi).astype(jnp.float32)        # (1, C)
    wv_t = jnp.transpose(wv).astype(jnp.bfloat16)                          # (C, C) (in, out)

    out_tok = pl.pallas_call(
        _cross_attn_kernel,
        out_shape=jax.ShapeDtypeStruct((B, N, C), x1.dtype),
        grid_spec=pltpu.PrefetchScalarGridSpec(
            num_scalar_prefetch=0,
            grid=(B, nq, nk),
            in_specs=[
                pl.BlockSpec((None, tq, C), lambda b, qi, ki: (b, qi, 0)),  # x1 tokens
                pl.BlockSpec((None, tk, C), lambda b, qi, ki: (b, ki, 0)),  # x2 tokens
                pl.BlockSpec((C, C), lambda b, qi, ki: (0, 0)),             # W_s
                pl.BlockSpec((1, C), lambda b, qi, ki: (0, 0)),             # b_s
                pl.BlockSpec((C, C), lambda b, qi, ki: (0, 0)),             # Wv^T
                pl.BlockSpec((1, C), lambda b, qi, ki: (0, 0)),             # bv
            ],
            out_specs=pl.BlockSpec((None, tq, C), lambda b, qi, ki: (b, qi, 0)),
            scratch_shapes=[
                pltpu.VMEM((tq, 1), jnp.float32),      # running max  m
                pltpu.VMEM((tq, 1), jnp.float32),      # running sum  l
                pltpu.VMEM((tq, C), jnp.float32),      # output accumulator
                pltpu.VMEM((tq, C), jnp.bfloat16),     # cached folded query q'
            ],
        ),
        compiler_params=pltpu.CompilerParams(
            dimension_semantics=("parallel", "parallel", "arbitrary"),
            vmem_limit_bytes=_vmem_limit_bytes(),
        ),
    )(x1_tok, x2_tok, ws, bs, wv_t, bv)

    # token-major (B, N, C) -> NCHW.
    return jnp.transpose(out_tok, (0, 2, 1)).reshape(B, C, H, W)


def cross_attention_ref(x1, x2, params):
    """Pure-JAX f32 reference mirroring the PyTorch forward exactly (NCHW)."""
    B, C, H, W = x1.shape
    N = H * W
    Cq = C // 8
    hi = jax.lax.Precision.HIGHEST
    wq = params["wq"].reshape(Cq, C); bq = params["bq"]
    wk = params["wk"].reshape(Cq, C); bk = params["bk"]
    wv = params["wv"].reshape(C, C);  bv = params["bv"]

    def conv1x1(x, w, b):  # x: (B, Cin, N)
        return jnp.einsum("oi,bin->bon", w, x, precision=hi) + b[None, :, None]

    x1f = x1.reshape(B, C, N)
    x2f = x2.reshape(B, C, N)
    query = jnp.transpose(conv1x1(x1f, wq, bq), (0, 2, 1))                 # (B, N, Cq)
    key = conv1x1(x2f, wk, bk)                                             # (B, Cq, N)
    value = conv1x1(x2f, wv, bv)                                           # (B, C, N)
    attn = jax.nn.softmax(
        jnp.einsum("bnc,bcm->bnm", query, key, precision=hi), axis=-1)
    out = jnp.einsum("bcn,bmn->bcm", value, attn, precision=hi)            # bmm(value, attn^T)
    return x1 + out.reshape(B, C, H, W)


if __name__ == "__main__":
    B, C, H, W = 2, 32, 16, 16   # channels divisible by 8; N = H*W = 256
    Cq = C // 8

    key = jax.random.PRNGKey(0)
    k1, k2, k3, k4, k5, k6, k7, k8 = jax.random.split(key, 8)

    x1 = jax.random.normal(k1, (B, C, H, W), dtype=jnp.float32)
    x2 = jax.random.normal(k2, (B, C, H, W), dtype=jnp.float32)

    # Deterministic synthetic parameters (Conv2d 1x1 shapes: (out, in, 1, 1)).
    params = {
        "wq": 0.1 * jax.random.normal(k3, (Cq, C, 1, 1), dtype=jnp.float32),
        "bq": 0.1 * jax.random.normal(k4, (Cq,), dtype=jnp.float32),
        "wk": 0.1 * jax.random.normal(k5, (Cq, C, 1, 1), dtype=jnp.float32),
        "bk": 0.1 * jax.random.normal(k6, (Cq,), dtype=jnp.float32),
        "wv": 0.1 * jax.random.normal(k7, (C, C, 1, 1), dtype=jnp.float32),
        "bv": 0.1 * jax.random.normal(k8, (C,), dtype=jnp.float32),
    }

    # Small tiles so the multi-tile online-softmax path (grid 2x2x2) is exercised.
    out = cross_attention_pallas(x1, x2, params, q_tile=128, kv_tile=128)
    out = jax.block_until_ready(out)

    ref = jax.block_until_ready(cross_attention_ref(x1, x2, params))
    # bf16 MXU operands + folded Wq.Wk + approx reciprocal => looser tolerance.
    np.testing.assert_allclose(np.asarray(out), np.asarray(ref),
                               rtol=2e-2, atol=2e-2)
    print("KERNEL_OK")
</pallas_src>

<mosaic_0001>
module attributes {stable_mosaic.version = 11 : i64} {
  func.func @_cross_attn_kernel(%arg0: i32, %arg1: i32, %arg2: i32, %arg3: memref<1x128x32xf32, #tpu.memory_space<vmem>>, %arg4: memref<1x128x32xbf16, #tpu.memory_space<vmem>>, %arg5: memref<32x32xbf16, #tpu.memory_space<vmem>>, %arg6: memref<1x32xf32, #tpu.memory_space<vmem>>, %arg7: memref<32x32xbf16, #tpu.memory_space<vmem>>, %arg8: memref<1x32xf32, #tpu.memory_space<vmem>>, %arg9: memref<1x128x32xf32, #tpu.memory_space<vmem>>, %arg10: memref<128x1xf32, #tpu.memory_space<vmem>>, %arg11: memref<128x1xf32, #tpu.memory_space<vmem>>, %arg12: memref<128x32xf32, #tpu.memory_space<vmem>>, %arg13: memref<128x32xbf16, #tpu.memory_space<vmem>>) attributes {dimension_semantics = [#tpu.dimension_semantics<parallel>, #tpu.dimension_semantics<parallel>, #tpu.dimension_semantics<arbitrary>], iteration_bounds = array<i64: 2, 2, 2>, scalar_prefetch = 0 : i64, scratch_operands = 4 : i64, tpu.core_type = #tpu.core_type<tc>, window_params = [{transform_indices = @transform_0, window_bounds = array<i64: 1, 128, 32>}, {transform_indices = @transform_1, window_bounds = array<i64: 1, 128, 32>}, {pipeline_mode = #tpu.pipeline_mode<synchronous>, transform_indices = @transform_2, window_bounds = array<i64: 32, 32>}, {pipeline_mode = #tpu.pipeline_mode<synchronous>, transform_indices = @transform_3, window_bounds = array<i64: 1, 32>}, {pipeline_mode = #tpu.pipeline_mode<synchronous>, transform_indices = @transform_4, window_bounds = array<i64: 32, 32>}, {pipeline_mode = #tpu.pipeline_mode<synchronous>, transform_indices = @transform_5, window_bounds = array<i64: 1, 32>}, {transform_indices = @transform_6, window_bounds = array<i64: 1, 128, 32>}]} {
    %c0_i32 = arith.constant 0 : i32
    %0 = arith.cmpi eq, %arg2, %c0_i32 : i32
    %1 = arith.extui %0 : i1 to i32
    %c0_i32_0 = arith.constant 0 : i32
    %2 = arith.cmpi ne, %1, %c0_i32_0 : i32
    scf.if %2 {
      %cst_26 = arith.constant 0xFF800000 : f32
      %39 = vector.broadcast %cst_26 : f32 to vector<128x1xf32>
      %c0_27 = arith.constant 0 : index
      %c0_28 = arith.constant 0 : index
      %40 = vector.load %arg10[%c0_27, %c0_28] : memref<128x1xf32, #tpu.memory_space<vmem>>, vector<128x1xf32>
      tpu.vector_store %arg10[%c0_27, %c0_28], %39 {strides = array<i32>} : memref<128x1xf32, #tpu.memory_space<vmem>>, vector<128x1xf32>,
      %cst_29 = arith.constant 0.000000e+00 : f32
      %41 = vector.broadcast %cst_29 : f32 to vector<128x1xf32>
      %c0_30 = arith.constant 0 : index
      %c0_31 = arith.constant 0 : index
      %42 = vector.load %arg11[%c0_30, %c0_31] : memref<128x1xf32, #tpu.memory_space<vmem>>, vector<128x1xf32>
      tpu.vector_store %arg11[%c0_30, %c0_31], %41 {strides = array<i32>} : memref<128x1xf32, #tpu.memory_space<vmem>>, vector<128x1xf32>,
      %cst_32 = arith.constant 0.000000e+00 : f32
      %43 = vector.broadcast %cst_32 : f32 to vector<128x32xf32>
      %c0_33 = arith.constant 0 : index
      %c0_34 = arith.constant 0 : index
      %44 = vector.load %arg12[%c0_33, %c0_34] : memref<128x32xf32, #tpu.memory_space<vmem>>, vector<128x32xf32>
      tpu.vector_store %arg12[%c0_33, %c0_34], %43 {strides = array<i32>} : memref<128x32xf32, #tpu.memory_space<vmem>>, vector<128x32xf32>,
      %c0_35 = arith.constant 0 : index
      %c0_36 = arith.constant 0 : index
      %c0_37 = arith.constant 0 : index
      %45 = vector.load %arg3[%c0_35, %c0_36, %c0_37] : memref<1x128x32xf32, #tpu.memory_space<vmem>>, vector<1x128x32xf32>
      %46 = vector.shape_cast %45 : vector<1x128x32xf32> to vector<128x32xf32>
      %47 = arith.truncf %46 : vector<128x32xf32> to vector<128x32xbf16>
      %c0_38 = arith.constant 0 : index
      %c0_39 = arith.constant 0 : index
      %48 = vector.load %arg5[%c0_38, %c0_39] : memref<32x32xbf16, #tpu.memory_space<vmem>>, vector<32x32xbf16>
      %cst_40 = arith.constant dense<0.000000e+00> : vector<128x32xf32>
      %49 = tpu.matmul %47, %48, %cst_40 {dimension_numbers = #tpu.dot_dimension_numbers<[1], [0], [0], [1], [0, 0, 1, 1], [], []>} : vector<128x32xbf16>, vector<32x32xbf16>, vector<128x32xf32> -> vector<128x32xf32>
      %c0_41 = arith.constant 0 : index
      %c0_42 = arith.constant 0 : index
      %50 = vector.load %arg6[%c0_41, %c0_42] : memref<1x32xf32, #tpu.memory_space<vmem>>, vector<1x32xf32>
      %51 = vector.broadcast %50 : vector<1x32xf32> to vector<128x32xf32>
      %52 = arith.addf %49, %51 : vector<128x32xf32>
      %53 = arith.truncf %52 : vector<128x32xf32> to vector<128x32xbf16>
      %c0_43 = arith.constant 0 : index
      %c0_44 = arith.constant 0 : index
      %54 = vector.load %arg13[%c0_43, %c0_44] : memref<128x32xbf16, #tpu.memory_space<vmem>>, vector<128x32xbf16>
      tpu.vector_store %arg13[%c0_43, %c0_44], %53 {strides = array<i32>} : memref<128x32xbf16, #tpu.memory_space<vmem>>, vector<128x32xbf16>,
    } else {
    }
    %c0 = arith.constant 0 : index
    %c0_1 = arith.constant 0 : index
    %c0_2 = arith.constant 0 : index
    %3 = vector.load %arg4[%c0, %c0_1, %c0_2] : memref<1x128x32xbf16, #tpu.memory_space<vmem>>, vector<1x128x32xbf16>
    %4 = vector.shape_cast %3 : vector<1x128x32xbf16> to vector<128x32xbf16>
    %c0_3 = arith.constant 0 : index
    %c0_4 = arith.constant 0 : index
    %5 = vector.load %arg13[%c0_3, %c0_4] : memref<128x32xbf16, #tpu.memory_space<vmem>>, vector<128x32xbf16>
    %cst = arith.constant dense<0.000000e+00> : vector<128x128xf32>
    %6 = tpu.matmul %5, %4, %cst {dimension_numbers = #tpu.dot_dimension_numbers<[1], [1], [0], [0], [0, 0, 1, 0], [], []>} : vector<128x32xbf16>, vector<128x32xbf16>, vector<128x128xf32> -> vector<128x128xf32>
    %c0_5 = arith.constant 0 : index
    %c0_6 = arith.constant 0 : index
    %7 = vector.load %arg7[%c0_5, %c0_6] : memref<32x32xbf16, #tpu.memory_space<vmem>>, vector<32x32xbf16>
    %cst_7 = arith.constant dense<0.000000e+00> : vector<128x32xf32>
    %8 = tpu.matmul %4, %7, %cst_7 {dimension_numbers = #tpu.dot_dimension_numbers<[1], [0], [0], [1], [0, 0, 1, 1], [], []>} : vector<128x32xbf16>, vector<32x32xbf16>, vector<128x32xf32> -> vector<128x32xf32>
    %c0_8 = arith.constant 0 : index
    %c0_9 = arith.constant 0 : index
    %9 = vector.load %arg8[%c0_8, %c0_9] : memref<1x32xf32, #tpu.memory_space<vmem>>, vector<1x32xf32>
    %10 = vector.broadcast %9 : vector<1x32xf32> to vector<128x32xf32>
    %11 = arith.addf %8, %10 : vector<128x32xf32>
    %c0_10 = arith.constant 0 : index
    %c0_11 = arith.constant 0 : index
    %12 = vector.load %arg10[%c0_10, %c0_11] : memref<128x1xf32, #tpu.memory_space<vmem>>, vector<128x1xf32>
    %cst_12 = arith.constant dense<0xFF800000> : vector<128xf32>
    %13 = vector.multi_reduction <maximumf>, %6, %cst_12 [1] : vector<128x128xf32> to vector<128xf32>
    %14 = vector.shape_cast %13 : vector<128xf32> to vector<128x1xf32>
    %15 = arith.maximumf %12, %14 : vector<128x1xf32>
    %16 = arith.subf %12, %15 : vector<128x1xf32>
    %17 = math.exp %16 : vector<128x1xf32>
    %18 = vector.broadcast %15 : vector<128x1xf32> to vector<128x128xf32>
    %19 = arith.subf %6, %18 : vector<128x128xf32>
    %20 = math.exp %19 : vector<128x128xf32>
    %c0_13 = arith.constant 0 : index
    %c0_14 = arith.constant 0 : index
    %21 = vector.load %arg11[%c0_13, %c0_14] : memref<128x1xf32, #tpu.memory_space<vmem>>, vector<128x1xf32>
    %22 = arith.mulf %17, %21 : vector<128x1xf32>
    %cst_15 = arith.constant dense<0.000000e+00> : vector<128xf32>
    %23 = vector.multi_reduction <add>, %20, %cst_15 [1] : vector<128x128xf32> to vector<128xf32>
    %24 = vector.shape_cast %23 : vector<128xf32> to vector<128x1xf32>
    %25 = arith.addf %22, %24 : vector<128x1xf32>
    %c0_16 = arith.constant 0 : index
    %c0_17 = arith.constant 0 : index
    %26 = vector.load %arg11[%c0_16, %c0_17] : memref<128x1xf32, #tpu.memory_space<vmem>>, vector<128x1xf32>
    tpu.vector_store %arg11[%c0_16, %c0_17], %25 {strides = array<i32>} : memref<128x1xf32, #tpu.memory_space<vmem>>, vector<128x1xf32>,
    %c0_18 = arith.constant 0 : index
    %c0_19 = arith.constant 0 : index
    %27 = vector.load %arg12[%c0_18, %c0_19] : memref<128x32xf32, #tpu.memory_space<vmem>>, vector<128x32xf32>
    %28 = vector.broadcast %17 : vector<128x1xf32> to vector<128x32xf32>
    %29 = arith.mulf %28, %27 : vector<128x32xf32>
    %30 = arith.truncf %20 : vector<128x128xf32> to vector<128x128xbf16>
    %31 = arith.truncf %11 : vector<128x32xf32> to vector<128x32xbf16>
    %cst_20 = arith.constant dense<0.000000e+00> : vector<128x32xf32>
    %32 = tpu.matmul %30, %31, %cst_20 {dimension_numbers = #tpu.dot_dimension_numbers<[1], [0], [0], [1], [0, 0, 1, 1], [], []>} : vector<128x128xbf16>, vector<128x32xbf16>, vector<128x32xf32> -> vector<128x32xf32>
    %33 = arith.addf %29, %32 : vector<128x32xf32>
    %c0_21 = arith.constant 0 : index
    %c0_22 = arith.constant 0 : index
    %34 = vector.load %arg12[%c0_21, %c0_22] : memref<128x32xf32, #tpu.memory_space<vmem>>, vector<128x32xf32>
    tpu.vector_store %arg12[%c0_21, %c0_22], %33 {strides = array<i32>} : memref<128x32xf32, #tpu.memory_space<vmem>>, vector<128x32xf32>,
    %c0_23 = arith.constant 0 : index
    %c0_24 = arith.constant 0 : index
    %35 = vector.load %arg10[%c0_23, %c0_24] : memref<128x1xf32, #tpu.memory_space<vmem>>, vector<128x1xf32>
    tpu.vector_store %arg10[%c0_23, %c0_24], %15 {strides = array<i32>} : memref<128x1xf32, #tpu.memory_space<vmem>>, vector<128x1xf32>,
    %c1_i32 = arith.constant 1 : i32
    %36 = arith.cmpi eq, %arg2, %c1_i32 : i32
    %37 = arith.extui %36 : i1 to i32
    %c0_i32_25 = arith.constant 0 : i32
    %38 = arith.cmpi ne, %37, %c0_i32_25 : i32
    scf.if %38 {
      %c0_26 = arith.constant 0 : index
      %c0_27 = arith.constant 0 : index
      %39 = vector.load %arg11[%c0_26, %c0_27] : memref<128x1xf32, #tpu.memory_space<vmem>>, vector<128x1xf32>
      %40 = tpu.reciprocal %39 {approx = true} : vector<128x1xf32> -> vector<128x1xf32>
      %c0_28 = arith.constant 0 : index
      %c0_29 = arith.constant 0 : index
      %c0_30 = arith.constant 0 : index
      %41 = vector.load %arg3[%c0_28, %c0_29, %c0_30] : memref<1x128x32xf32, #tpu.memory_space<vmem>>, vector<1x128x32xf32>
      %42 = vector.shape_cast %41 : vector<1x128x32xf32> to vector<128x32xf32>
      %c0_31 = arith.constant 0 : index
      %c0_32 = arith.constant 0 : index
      %43 = vector.load %arg12[%c0_31, %c0_32] : memref<128x32xf32, #tpu.memory_space<vmem>>, vector<128x32xf32>
      %44 = vector.broadcast %40 : vector<128x1xf32> to vector<128x32xf32>
      %45 = arith.mulf %43, %44 : vector<128x32xf32>
      %46 = arith.addf %42, %45 : vector<128x32xf32>
      %c0_33 = arith.constant 0 : index
      %c0_34 = arith.constant 0 : index
      %c0_35 = arith.constant 0 : index
      %47 = vector.load %arg9[%c0_33, %c0_34, %c0_35] : memref<1x128x32xf32, #tpu.memory_space<vmem>>, vector<1x128x32xf32>
      %48 = vector.shape_cast %47 : vector<1x128x32xf32> to vector<128x32xf32>
      %49 = vector.shape_cast %46 : vector<128x32xf32> to vector<1x128x32xf32>
      tpu.vector_store %arg9[%c0_33, %c0_34, %c0_35], %49 {strides = array<i32>} : memref<1x128x32xf32, #tpu.memory_space<vmem>>, vector<1x128x32xf32>,
    } else {
    }
    return
  }
  func.func @transform_0(%arg0: i32, %arg1: i32, %arg2: i32) -> (i32, i32, i32) {
    %c0_i32 = arith.constant 0 : i32
    %c0_i32_0 = arith.constant 0 : i32
    return %arg0, %arg1, %c0_i32 : i32, i32, i32
  }
  func.func @transform_1(%arg0: i32, %arg1: i32, %arg2: i32) -> (i32, i32, i32) {
    %c0_i32 = arith.constant 0 : i32
    %c0_i32_0 = arith.constant 0 : i32
    return %arg0, %arg2, %c0_i32 : i32, i32, i32
  }
  func.func @transform_2(%arg0: i32, %arg1: i32, %arg2: i32) -> (i32, i32) {
    %c0_i32 = arith.constant 0 : i32
    %c0_i32_0 = arith.constant 0 : i32
    %c0_i32_1 = arith.constant 0 : i32
    return %c0_i32, %c0_i32_0 : i32, i32
  }
  func.func @transform_3(%arg0: i32, %arg1: i32, %arg2: i32) -> (i32, i32) {
    %c0_i32 = arith.constant 0 : i32
    %c0_i32_0 = arith.constant 0 : i32
    %c0_i32_1 = arith.constant 0 : i32
    return %c0_i32, %c0_i32_0 : i32, i32
  }
  func.func @transform_4(%arg0: i32, %arg1: i32, %arg2: i32) -> (i32, i32) {
    %c0_i32 = arith.constant 0 : i32
    %c0_i32_0 = arith.constant 0 : i32
    %c0_i32_1 = arith.constant 0 : i32
    return %c0_i32, %c0_i32_0 : i32, i32
  }
  func.func @transform_5(%arg0: i32, %arg1: i32, %arg2: i32) -> (i32, i32) {
    %c0_i32 = arith.constant 0 : i32
    %c0_i32_0 = arith.constant 0 : i32
    %c0_i32_1 = arith.constant 0 : i32
    return %c0_i32, %c0_i32_0 : i32, i32
  }
  func.func @transform_6(%arg0: i32, %arg1: i32, %arg2: i32) -> (i32, i32, i32) {
    %c0_i32 = arith.constant 0 : i32
    %c0_i32_0 = arith.constant 0 : i32
    return %arg0, %arg1, %c0_i32 : i32, i32, i32
  }
}

</mosaic_0001>

<llo_original>
// kernel: tpu_custom_call.1
$region0: #{tpu_custom_call.1}
  #allocation0 [shape = 'u32[]', space=smem, size = 0x4, offset = 0x4, fixed_abs, tag = 'smem constant byte address 0x4 - core index']
  #allocation1 [shape = 'u32[144,128]{1,0:T(1,128)}', space=vmem, size = 0x12000, scoped, tag = 'internal scratch']
  #allocation2 [shape = 'f32[128,1]{1,0:T(8,128)}', space=vmem, size = 0x10000, scoped, tag = 'scratch operand']
  #allocation3 [shape = 'f32[128,1]{1,0:T(8,128)}', space=vmem, size = 0x10000, scoped, tag = 'scratch operand']
  #allocation4 [shape = 'f32[128,32]{1,0:T(8,128)}', space=vmem, size = 0x10000, scoped, tag = 'scratch operand']
  #allocation5 [shape = 'bf16[128,32]{1,0:T(16,128)(2,1)}', space=vmem, size = 0x8000, scoped, tag = 'scratch operand']
  %s0 = inlined_call_operand.vmem [shape: f32[2,256,32], index: 0, kind: input, shape index: {}]
  %s1 = inlined_call_operand.vmem [shape: bf16[2,256,32], index: 1, kind: input, shape index: {}]
  %s2 = inlined_call_operand.vmem [shape: bf16[32,32], index: 2, kind: input, shape index: {}]
  %s3 = inlined_call_operand.vmem [shape: f32[1,32], index: 3, kind: input, shape index: {}]
  %s4 = inlined_call_operand.vmem [shape: bf16[32,32], index: 4, kind: input, shape index: {}]
  %s5 = inlined_call_operand.vmem [shape: f32[1,32], index: 5, kind: input, shape index: {}]
  %s6 = inlined_call_operand.vmem [shape: f32[2,256,32], index: 6, kind: output, shape index: {}]
  %s7 = sld [smem:[#allocation0]]
  $region65: #{tpu_custom_call.1} parent=0
    _
  %s9 = ssub.s32 1, %s7
  %s10 = scalar_select 0, %s9, %s7
  loop: start=0, step=1, limit=10
  $region2: #{tpu_custom_call.1} parent=0 // loop_pre_header
    _
  $region3: #{tpu_custom_call.1} parent=0 // loop_header
    %s12 = sphi 0, %s16
    %p13 = scmp.ge.s32.totalorder %s12, 10
    %s19 = sphi 0, %s38
    %s20 = sphi 0, %s34
    %s21 = sphi 0, %s30
    %s22 = sphi 0, %s19
    %s23 = sphi 0, %s20
    %s24 = sphi 0, %s21
    %s25 = sphi 0, %s22
    %s26 = sphi 0, %s23
    %s27 = sphi 0, %s24
    %s43 = sphi 0, %s45
    %s46 = sphi 0, %s43
    %s47 = sphi 0, %s46
    %s63 = sphi 0, %s47
    %s71 = sphi 0, %s73
    %s74 = sphi 0, %s71
    %s75 = sphi 0, %s74
    %s91 = sphi 0, %s75
    %s95 = sphi 0, %s95
    %s97 = sphi 0, %s95
    %s98 = sphi 0, %s97
    %s112 = sphi 0, %s98
    %s116 = sphi 0, %s116
    %s118 = sphi 0, %s116
    %s119 = sphi 0, %s118
    %s133 = sphi 0, %s119
    %s137 = sphi 0, %s137
    %s139 = sphi 0, %s137
    %s140 = sphi 0, %s139
    %s154 = sphi 0, %s140
    %s158 = sphi 0, %s158
    %s160 = sphi 0, %s158
    %s161 = sphi 0, %s160
    %s175 = sphi 0, %s161
    %s183 = sphi 0, %s185
    %s186 = sphi 0, %s183
    %s187 = sphi 0, %s186
    %s203 = sphi 0, %s187
  $region4: #{tpu_custom_call.1} parent=0 // loop_header_branch
    %15 = sbr.rel (%p13) target = $region8
  $region5: #{tpu_custom_call.1} parent=0 // loop_body
    %s17 = ssub.s32 %s12, 1
    %s18 = ssub.s32 %s12, 2
    %s28 = sadd.s32 1, %s21
    %p29 = scmp.ge.s32.totalorder %s28, 2
    %s30 = scalar_select %p29, 0, %s28
    %s31 = sadd.s32 1, %s20
    %s32 = scalar_select %p29, %s31, %s20
    %p33 = scmp.ge.s32.totalorder %s32, 2
    %s34 = scalar_select %p33, 0, %s32
    %s35 = sadd.s32 1, %s19
    %s36 = scalar_select %p33, %s35, %s19
    %p37 = scmp.ge.s32.totalorder %s36, 2
    %s38 = scalar_select %p37, 0, %s36
    %s39 = ssub.s32 %s19, %s38
    %s40 = ssub.s32 %s20, %s34
    %s41 = sor.u32 %s39, %s40
    %p42 = scmp.eq.s32.totalorder %s41, 0
    %s44 = sadd.s32 %s43, 1
    %s45 = scalar_select %p42, %s43, %s44
    %p48 = pneg %p42
    %p49 = scmp.eq.s32.totalorder %s12, 7
    %p50 = por %p48, %p49
    %p51 = scmp.ne.s32.totalorder %s43, %s46
    %p52 = scmp.eq.s32.totalorder %s12, 0
    %p53 = por %p51, %p52
    %p54 = scmp.ne.s32.totalorder %s43, %s46
    %p55 = scmp.eq.s32.totalorder %s17, 7
    %p56 = por %p54, %p55
    %p57 = scmp.ne.s32.totalorder %s46, %s47
    %p58 = scmp.eq.s32.totalorder %s17, 0
    %p59 = por %p57, %p58
    %p60 = scmp.ne.s32.totalorder %s46, %s47
    %p61 = scmp.eq.s32.totalorder %s18, 7
    %p62 = por %p60, %p61
    %p64 = scmp.ne.s32.totalorder %s47, %s63
    %p65 = scmp.eq.s32.totalorder %s18, 0
    %p66 = por %p64, %p65
    %s67 = ssub.s32 %s19, %s38
    %s68 = ssub.s32 %s21, %s30
    %s69 = sor.u32 %s67, %s68
    %p70 = scmp.eq.s32.totalorder %s69, 0
    %s72 = sadd.s32 %s71, 1
    %s73 = scalar_select %p70, %s71, %s72
    %p76 = pneg %p70
    %p77 = scmp.eq.s32.totalorder %s12, 7
    %p78 = por %p76, %p77
    %p79 = scmp.ne.s32.totalorder %s71, %s74
    %p80 = scmp.eq.s32.totalorder %s12, 0
    %p81 = por %p79, %p80
    %p82 = scmp.ne.s32.totalorder %s71, %s74
    %p83 = scmp.eq.s32.totalorder %s17, 7
    %p84 = por %p82, %p83
    %p85 = scmp.ne.s32.totalorder %s74, %s75
    %p86 = scmp.eq.s32.totalorder %s17, 0
    %p87 = por %p85, %p86
    %p88 = scmp.ne.s32.totalorder %s74, %s75
    %p89 = scmp.eq.s32.totalorder %s18, 7
    %p90 = por %p88, %p89
    %p92 = scmp.ne.s32.totalorder %s75, %s91
    %p93 = scmp.eq.s32.totalorder %s18, 0
    %p94 = por %p92, %p93
    %s96 = sadd.s32 %s95, 1
    %p99 = scmp.eq.s32.totalorder %s12, 7
    %p100 = scmp.ne.s32.totalorder %s95, %s97
    %p101 = scmp.eq.s32.totalorder %s12, 0
    %p102 = por %p100, %p101
    %p103 = scmp.ne.s32.totalorder %s95, %s97
    %p104 = scmp.eq.s32.totalorder %s17, 7
    %p105 = por %p103, %p104
    %p106 = scmp.ne.s32.totalorder %s97, %s98
    %p107 = scmp.eq.s32.totalorder %s17, 0
    %p108 = por %p106, %p107
    %p109 = scmp.ne.s32.totalorder %s97, %s98
    %p110 = scmp.eq.s32.totalorder %s18, 7
    %p111 = por %p109, %p110
    %p113 = scmp.ne.s32.totalorder %s98, %s112
    %p114 = scmp.eq.s32.totalorder %s18, 0
    %p115 = por %p113, %p114
    %s117 = sadd.s32 %s116, 1
    %p120 = scmp.eq.s32.totalorder %s12, 7
    %p121 = scmp.ne.s32.totalorder %s116, %s118
    %p122 = scmp.eq.s32.totalorder %s12, 0
    %p123 = por %p121, %p122
    %p124 = scmp.ne.s32.totalorder %s116, %s118
    %p125 = scmp.eq.s32.totalorder %s17, 7
    %p126 = por %p124, %p125
    %p127 = scmp.ne.s32.totalorder %s118, %s119
    %p128 = scmp.eq.s32.totalorder %s17, 0
    %p129 = por %p127, %p128
    %p130 = scmp.ne.s32.totalorder %s118, %s119
    %p131 = scmp.eq.s32.totalorder %s18, 7
    %p132 = por %p130, %p131
    %p134 = scmp.ne.s32.totalorder %s119, %s133
    %p135 = scmp.eq.s32.totalorder %s18, 0
    %p136 = por %p134, %p135
    %s138 = sadd.s32 %s137, 1
    %p141 = scmp.eq.s32.totalorder %s12, 7
    %p142 = scmp.ne.s32.totalorder %s137, %s139
    %p143 = scmp.eq.s32.totalorder %s12, 0
    %p144 = por %p142, %p143
    %p145 = scmp.ne.s32.totalorder %s137, %s139
    %p146 = scmp.eq.s32.totalorder %s17, 7
    %p147 = por %p145, %p146
    %p148 = scmp.ne.s32.totalorder %s139, %s140
    %p149 = scmp.eq.s32.totalorder %s17, 0
    %p150 = por %p148, %p149
    %p151 = scmp.ne.s32.totalorder %s139, %s140
    %p152 = scmp.eq.s32.totalorder %s18, 7
    %p153 = por %p151, %p152
    %p155 = scmp.ne.s32.totalorder %s140, %s154
    %p156 = scmp.eq.s32.totalorder %s18, 0
    %p157 = por %p155, %p156
    %s159 = sadd.s32 %s158, 1
    %p162 = scmp.eq.s32.totalorder %s12, 7
    %p163 = scmp.ne.s32.totalorder %s158, %s160
    %p164 = scmp.eq.s32.totalorder %s12, 0
    %p165 = por %p163, %p164
    %p166 = scmp.ne.s32.totalorder %s158, %s160
    %p167 = scmp.eq.s32.totalorder %s17, 7
    %p168 = por %p166, %p167
    %p169 = scmp.ne.s32.totalorder %s160, %s161
    %p170 = scmp.eq.s32.totalorder %s17, 0
    %p171 = por %p169, %p170
    %p172 = scmp.ne.s32.totalorder %s160, %s161
    %p173 = scmp.eq.s32.totalorder %s18, 7
    %p174 = por %p172, %p173
    %p176 = scmp.ne.s32.totalorder %s161, %s175
    %p177 = scmp.eq.s32.totalorder %s18, 0
    %p178 = por %p176, %p177
    %s179 = ssub.s32 %s19, %s38
    %s180 = ssub.s32 %s20, %s34
    %s181 = sor.u32 %s179, %s180
    %p182 = scmp.eq.s32.totalorder %s181, 0
    %s184 = sadd.s32 %s183, 1
    %s185 = scalar_select %p182, %s183, %s184
    %p188 = pneg %p182
    %p189 = scmp.eq.s32.totalorder %s12, 7
    %p190 = por %p188, %p189
    %p191 = scmp.ne.s32.totalorder %s183, %s186
    %p192 = scmp.eq.s32.totalorder %s12, 0
    %p193 = por %p191, %p192
    %p194 = scmp.ne.s32.totalorder %s183, %s186
    %p195 = scmp.eq.s32.totalorder %s17, 7
    %p196 = por %p194, %p195
    %p197 = scmp.ne.s32.totalorder %s186, %s187
    %p198 = scmp.eq.s32.totalorder %s17, 0
    %p199 = por %p197, %p198
    %p200 = scmp.ne.s32.totalorder %s186, %s187
    %p201 = scmp.eq.s32.totalorder %s18, 7
    %p202 = por %p200, %p201
    %p204 = scmp.ne.s32.totalorder %s187, %s203
    %p205 = scmp.eq.s32.totalorder %s18, 0
    %p206 = por %p204, %p205
    %p207 = scmp.le.s32.totalorder 1, %s12
    %p208 = scmp.lt.s32.totalorder %s12, 9
    %p209 = pnand %p207, %p208
    %p210 = pneg %p209
    // Predicated region
    $region9: #{tpu_custom_call.1} parent=5 // pred_check
      _
    $region10: #{tpu_custom_call.1} parent=5 // pred_check_branch
      %212 = sbr.rel (%p209) target = $region12
    $region11: #{tpu_custom_call.1} parent=5 // pred_region
      %s213 = ssub.s32 %s12, 1
      // Predicated region
      $region13: #{tpu_custom_call.1} parent=11 // pred_check
        %p214 = pneg %p108
      $region14: #{tpu_custom_call.1} parent=11 // pred_check_branch
        %216 = sbr.rel (%p214) target = $region16
      $region15: #{tpu_custom_call.1} parent=11 // pred_region
        _
      $region16: #{tpu_custom_call.1} parent=11 // pred_fallthru
        _
      // Predicated region
      $region17: #{tpu_custom_call.1} parent=11 // pred_check
        %p217 = pneg %p129
      $region18: #{tpu_custom_call.1} parent=11 // pred_check_branch
        %219 = sbr.rel (%p217) target = $region20
      $region19: #{tpu_custom_call.1} parent=11 // pred_region
        _
      $region20: #{tpu_custom_call.1} parent=11 // pred_fallthru
        _
      // Predicated region
      $region21: #{tpu_custom_call.1} parent=11 // pred_check
        %p220 = pneg %p150
      $region22: #{tpu_custom_call.1} parent=11 // pred_check_branch
        %222 = sbr.rel (%p220) target = $region24
      $region23: #{tpu_custom_call.1} parent=11 // pred_region
        _
      $region24: #{tpu_custom_call.1} parent=11 // pred_fallthru
        _
      // Predicated region
      $region25: #{tpu_custom_call.1} parent=11 // pred_check
        %p223 = pneg %p171
      $region26: #{tpu_custom_call.1} parent=11 // pred_check_branch
        %225 = sbr.rel (%p223) target = $region28
      $region27: #{tpu_custom_call.1} parent=11 // pred_region
        _
      $region28: #{tpu_custom_call.1} parent=11 // pred_fallthru
        _
    $region12: #{tpu_custom_call.1} parent=5 // pred_fallthru
      _
    %p226 = scmp.lt.s32.totalorder %s12, 8
    // Predicated region
    $region29: #{tpu_custom_call.1} parent=5 // pred_check
      %p227 = pneg %p226
    $region30: #{tpu_custom_call.1} parent=5 // pred_check_branch
      %229 = sbr.rel (%p227) target = $region32
    $region31: #{tpu_custom_call.1} parent=5 // pred_region
      // Predicated region
      $region33: #{tpu_custom_call.1} parent=31 // pred_check
        %p230 = pneg %p53
      $region34: #{tpu_custom_call.1} parent=31 // pred_check_branch
        %232 = sbr.rel (%p230) target = $region36
      $region35: #{tpu_custom_call.1} parent=31 // pred_region
        %s233 = smul.u32 16, %s20
        %p234 = scmp.lt.s32.totalorder %s19, 1
        %s235 = scalar_select %p234, %s19, 1
        %p236 = scmp.lt.s32.totalorder %s233, 31
        %s237 = scalar_select %p236, %s233, 31
        %s238 = smul.addr %s235, 32
        %s239 = sadd.s32 %s237, %s238
        %s240 = smul.addr %s239, 8
        %s241 = scalar_lea.vmem %s0, %s240
        %s242 = smul.u32 16, %s20
      $region36: #{tpu_custom_call.1} parent=31 // pred_fallthru
        _
      // Predicated region
      $region37: #{tpu_custom_call.1} parent=31 // pred_check
        %p243 = pneg %p81
      $region38: #{tpu_custom_call.1} parent=31 // pred_check_branch
        %245 = sbr.rel (%p243) target = $region40
      $region39: #{tpu_custom_call.1} parent=31 // pred_region
        %s246 = smul.u32 16, %s21
        %p247 = scmp.lt.s32.totalorder %s19, 1
        %s248 = scalar_select %p247, %s19, 1
        %p249 = scmp.lt.s32.totalorder %s246, 31
        %s250 = scalar_select %p249, %s246, 31
        %s251 = smul.addr %s248, 32
        %s252 = sadd.s32 %s250, %s251
        %s253 = smul.addr %s252, 4
        %s254 = scalar_lea.vmem %s1, %s253
        %s255 = smul.u32 16, %s21
      $region40: #{tpu_custom_call.1} parent=31 // pred_fallthru
        _
    $region32: #{tpu_custom_call.1} parent=5 // pred_fallthru
      _
    %p256 = scmp.le.s32.totalorder 1, %s12
    %p257 = scmp.lt.s32.totalorder %s12, 9
    %p258 = pnand %p256, %p257
    %p259 = pneg %p258
    // Predicated region
    $region41: #{tpu_custom_call.1} parent=5 // pred_check
      _
    $region42: #{tpu_custom_call.1} parent=5 // pred_check_branch
      %261 = sbr.rel (%p258) target = $region44
    $region43: #{tpu_custom_call.1} parent=5 // pred_region
      %s262 = ssub.s32 %s12, 1
      %s263 = smul.u32 16, %s23
      %p264 = scmp.lt.s32.totalorder %s22, 1
      %s265 = scalar_select %p264, %s22, 1
      %p266 = scmp.lt.s32.totalorder %s263, 31
      %s267 = scalar_select %p266, %s263, 31
      %s268 = smul.addr %s265, 32
      %s269 = sadd.s32 %s267, %s268
      %s270 = smul.addr %s269, 8
      %s271 = scalar_lea.vmem %s0, %s270
      %p272 = pneg %p59
      %p273 = pneg %p56
      %s274 = smul.u32 16, %s24
      %p275 = scmp.lt.s32.totalorder %s22, 1
      %s276 = scalar_select %p275, %s22, 1
      %p277 = scmp.lt.s32.totalorder %s274, 31
      %s278 = scalar_select %p277, %s274, 31
      %s279 = smul.addr %s276, 32
      %s280 = sadd.s32 %s278, %s279
      %s281 = smul.addr %s280, 4
      %s282 = scalar_lea.vmem %s1, %s281
      %p283 = pneg %p87
      %p284 = pneg %p84
      %p285 = pneg %p108
      %p286 = pneg %p105
      %p287 = pneg %p129
      %p288 = pneg %p126
      %p289 = pneg %p150
      %p290 = pneg %p147
      %p291 = pneg %p171
      %p292 = pneg %p168
      %p293 = pneg %p199
      %p294 = pneg %p196
      %s295 = smul.u32 16, %s23
      %p296 = scmp.lt.s32.totalorder %s22, 1
      %s297 = scalar_select %p296, %s22, 1
      %p298 = scmp.lt.s32.totalorder %s295, 31
      %s299 = scalar_select %p298, %s295, 31
      %s300 = smul.addr %s297, 32
      %s301 = sadd.s32 %s299, %s300
      %s302 = smul.addr %s301, 8
      %s303 = scalar_lea.vmem %s6, %s302
      %s304 = smul.u32 16, %s23
      %p305 = scmp.lt.s32.totalorder %s22, 1
      %s306 = scalar_select %p305, %s22, 1
      %p307 = scmp.lt.s32.totalorder %s304, 31
      %s308 = scalar_select %p307, %s304, 31
      %s309 = smul.addr %s306, 32
      %s310 = sadd.s32 %s308, %s309
      %s311 = smul.addr %s310, 8
      %s312 = scalar_lea.vmem %s0, %s311
      %s313 = smul.u32 16, %s23
      %s314 = smul.u32 16, %s24
      %p315 = scmp.lt.s32.totalorder %s22, 1
      %s316 = scalar_select %p315, %s22, 1
      %p317 = scmp.lt.s32.totalorder %s314, 31
      %s318 = scalar_select %p317, %s314, 31
      %s319 = smul.addr %s316, 32
      %s320 = sadd.s32 %s318, %s319
      %s321 = smul.addr %s320, 4
      %s322 = scalar_lea.vmem %s1, %s321
      %s323 = smul.u32 16, %s24
      %s324 = smul.u32 16, %s23
      %p325 = scmp.lt.s32.totalorder %s22, 1
      %s326 = scalar_select %p325, %s22, 1
      %p327 = scmp.lt.s32.totalorder %s324, 31
      %s328 = scalar_select %p327, %s324, 31
      %s329 = smul.addr %s326, 32
      %s330 = sadd.s32 %s328, %s329
      %s331 = smul.addr %s330, 8
      %s332 = scalar_lea.vmem %s6, %s331
      %s333 = smul.u32 16, %s23
      %p335 = scmp.eq.s32.totalorder %s24, 0
      // Predicated region
      $region45: #{tpu_custom_call.1} parent=43 // pred_check
        %p336 = pneg %p335
      $region46: #{tpu_custom_call.1} parent=43 // pred_check_branch
        %338 = sbr.rel (%p336) target = $region48
      $region47: #{tpu_custom_call.1} parent=43 // pred_region
        %vm339 = vcmask 7168
        %340 = vst.msk [vmem:[#allocation2] sm:$0xff] %vm339, -inf
        %341 = vst.msk [vmem:[#allocation2 + $0x8] sm:$0xff] %vm339, -inf
        %342 = vst.msk [vmem:[#allocation2 + $0x10] sm:$0xff] %vm339, -inf
        %343 = vst.msk [vmem:[#allocation2 + $0x18] sm:$0xff] %vm339, -inf
        %344 = vst.msk [vmem:[#allocation2 + $0x20] sm:$0xff] %vm339, -inf
        %345 = vst.msk [vmem:[#allocation2 + $0x28] sm:$0xff] %vm339, -inf
        %346 = vst.msk [vmem:[#allocation2 + $0x30] sm:$0xff] %vm339, -inf
        %347 = vst.msk [vmem:[#allocation2 + $0x38] sm:$0xff] %vm339, -inf
        %348 = vst.msk [vmem:[#allocation2 + $0x40] sm:$0xff] %vm339, -inf
        %349 = vst.msk [vmem:[#allocation2 + $0x48] sm:$0xff] %vm339, -inf
        %350 = vst.msk [vmem:[#allocation2 + $0x50] sm:$0xff] %vm339, -inf
        %351 = vst.msk [vmem:[#allocation2 + $0x58] sm:$0xff] %vm339, -inf
        %352 = vst.msk [vmem:[#allocation2 + $0x60] sm:$0xff] %vm339, -inf
        %353 = vst.msk [vmem:[#allocation2 + $0x68] sm:$0xff] %vm339, -inf
        %354 = vst.msk [vmem:[#allocation2 + $0x70] sm:$0xff] %vm339, -inf
        %355 = vst.msk [vmem:[#allocation2 + $0x78] sm:$0xff] %vm339, -inf
        %356 = vst.msk [vmem:[#allocation3] sm:$0xff] %vm339, 0.0
        %357 = vst.msk [vmem:[#allocation3 + $0x8] sm:$0xff] %vm339, 0.0
        %358 = vst.msk [vmem:[#allocation3 + $0x10] sm:$0xff] %vm339, 0.0
        %359 = vst.msk [vmem:[#allocation3 + $0x18] sm:$0xff] %vm339, 0.0
        %360 = vst.msk [vmem:[#allocation3 + $0x20] sm:$0xff] %vm339, 0.0
        %361 = vst.msk [vmem:[#allocation3 + $0x28] sm:$0xff] %vm339, 0.0
        %362 = vst.msk [vmem:[#allocation3 + $0x30] sm:$0xff] %vm339, 0.0
        %363 = vst.msk [vmem:[#allocation3 + $0x38] sm:$0xff] %vm339, 0.0
        %364 = vst.msk [vmem:[#allocation3 + $0x40] sm:$0xff] %vm339, 0.0
        %365 = vst.msk [vmem:[#allocation3 + $0x48] sm:$0xff] %vm339, 0.0
        %366 = vst.msk [vmem:[#allocation3 + $0x50] sm:$0xff] %vm339, 0.0
        %367 = vst.msk [vmem:[#allocation3 + $0x58] sm:$0xff] %vm339, 0.0
        %368 = vst.msk [vmem:[#allocation3 + $0x60] sm:$0xff] %vm339, 0.0
        %369 = vst.msk [vmem:[#allocation3 + $0x68] sm:$0xff] %vm339, 0.0
        %370 = vst.msk [vmem:[#allocation3 + $0x70] sm:$0xff] %vm339, 0.0
        %371 = vst.msk [vmem:[#allocation3 + $0x78] sm:$0xff] %vm339, 0.0
        %vm372 = vcmask 261120
        %373 = vst.msk [vmem:[#allocation4] sm:$0xff] %vm372, 0.0
        %374 = vst.msk [vmem:[#allocation4 + $0x8] sm:$0xff] %vm372, 0.0
        %375 = vst.msk [vmem:[#allocation4 + $0x10] sm:$0xff] %vm372, 0.0
        %376 = vst.msk [vmem:[#allocation4 + $0x18] sm:$0xff] %vm372, 0.0
        %377 = vst.msk [vmem:[#allocation4 + $0x20] sm:$0xff] %vm372, 0.0
        %378 = vst.msk [vmem:[#allocation4 + $0x28] sm:$0xff] %vm372, 0.0
        %379 = vst.msk [vmem:[#allocation4 + $0x30] sm:$0xff] %vm372, 0.0
        %380 = vst.msk [vmem:[#allocation4 + $0x38] sm:$0xff] %vm372, 0.0
        %381 = vst.msk [vmem:[#allocation4 + $0x40] sm:$0xff] %vm372, 0.0
        %382 = vst.msk [vmem:[#allocation4 + $0x48] sm:$0xff] %vm372, 0.0
        %383 = vst.msk [vmem:[#allocation4 + $0x50] sm:$0xff] %vm372, 0.0
        %384 = vst.msk [vmem:[#allocation4 + $0x58] sm:$0xff] %vm372, 0.0
        %385 = vst.msk [vmem:[#allocation4 + $0x60] sm:$0xff] %vm372, 0.0
        %386 = vst.msk [vmem:[#allocation4 + $0x68] sm:$0xff] %vm372, 0.0
        %387 = vst.msk [vmem:[#allocation4 + $0x70] sm:$0xff] %vm372, 0.0
        %388 = vst.msk [vmem:[#allocation4 + $0x78] sm:$0xff] %vm372, 0.0
        %v389 = vld [vmem:[%s312] sm:$0xff]
        %v390 = vld [vmem:[%s312 + $0x8] sm:$0xff]
        %v391 = vld [vmem:[%s312 + $0x10] sm:$0xff]
        %v392 = vld [vmem:[%s312 + $0x18] sm:$0xff]
        %v393 = vld [vmem:[%s312 + $0x20] sm:$0xff]
        %v394 = vld [vmem:[%s312 + $0x28] sm:$0xff]
        %v395 = vld [vmem:[%s312 + $0x30] sm:$0xff]
        %v396 = vld [vmem:[%s312 + $0x38] sm:$0xff]
        %v397 = vld [vmem:[%s312 + $0x40] sm:$0xff]
        %v398 = vld [vmem:[%s312 + $0x48] sm:$0xff]
        %v399 = vld [vmem:[%s312 + $0x50] sm:$0xff]
        %v400 = vld [vmem:[%s312 + $0x58] sm:$0xff]
        %v401 = vld [vmem:[%s312 + $0x60] sm:$0xff]
        %v402 = vld [vmem:[%s312 + $0x68] sm:$0xff]
        %v403 = vld [vmem:[%s312 + $0x70] sm:$0xff]
        %v404 = vld [vmem:[%s312 + $0x78] sm:$0xff]
        %v405 = vpack.c.bf16 %v390, %v389
        %v406 = vpack.c.bf16 %v392, %v391
        %v407 = vpack.c.bf16 %v394, %v393
        %v408 = vpack.c.bf16 %v396, %v395
        %v409 = vpack.c.bf16 %v398, %v397
        %v410 = vpack.c.bf16 %v400, %v399
        %v411 = vpack.c.bf16 %v402, %v401
        %v412 = vpack.c.bf16 %v404, %v403
        %v413 = vld [vmem:[%s2] sm:$0xf]
        %v414 = vld [vmem:[%s2 + $0x4] sm:$0xf]
        %v415 = vld [vmem:[%s2 + $0x8] sm:$0xf]
        %v416 = vld [vmem:[%s2 + $0xc] sm:$0xf]
        %v417 = vld [vmem:[%s3] sm:$0x1]
        %v419 = vlaneseq
        %v420 = vshrl.u32 %v419, 7
        %v421 = vsub.s32 0, %v420
        %v422 = vrot.slane %v417, %v421
        %v428 = vunpack.c.l.b16 %v413
        %v429 = vunpack.c.l.b16 %v414
        %v430 = vunpack.c.l.b16 %v415
        %v431 = vunpack.c.l.b16 %v416
        %v432 = vpack.c.b16 %v429, %v428
        %v433 = vpack.c.b16 %v431, %v430
        %v437 = vsel %vm372, %v405, 0
        %v440 = vsel %vm372, %v406, 0
        %v443 = vsel %vm372, %v407, 0
        %v446 = vsel %vm372, %v408, 0
        %v449 = vsel %vm372, %v409, 0
        %v452 = vsel %vm372, %v410, 0
        %v455 = vsel %vm372, %v411, 0
        %v458 = vsel %vm372, %v412, 0
        %460 = vmatprep.subr.bf16.mxu0 0
        %461 = vmatpush1.bf16.msra.mxu0 %v432
        %462 = vmatprep.subr.bf16.mxu0 0
        %463 = vmatpush1.bf16.msra.mxu0 %v433
        %464 = vmatprep.subr.bf16.mxu0 0
        %465 = vmatpush1.bf16.msra.mxu0 0
        %466 = vmatprep.subr.bf16.mxu0 0
        %467 = vmatpush1.bf16.msra.mxu0 0
        %468 = vmatprep.subr.bf16.mxu0 0
        %469 = vmatpush1.bf16.msra.mxu0 0
        %470 = vmatprep.subr.bf16.mxu0 0
        %471 = vmatpush1.bf16.msra.mxu0 0
        %472 = vmatprep.subr.bf16.mxu0 0
        %473 = vmatpush1.bf16.msra.mxu0 0
        %474 = vmatprep.subr.bf16.mxu0 0
        %475 = vmatpush1.bf16.msra.mxu0 0
        %476 = vmatprep.subr.bf16.mxu0 0
        %477 = vmatpush1.bf16.msra.mxu0 0
        %478 = vmatprep.subr.bf16.mxu0 0
        %479 = vmatpush1.bf16.msra.mxu0 0
        %480 = vmatprep.subr.bf16.mxu0 0
        %481 = vmatpush1.bf16.msra.mxu0 0
        %482 = vmatprep.subr.bf16.mxu0 0
        %483 = vmatpush1.bf16.msra.mxu0 0
        %484 = vmatprep.subr.bf16.mxu0 0
        %485 = vmatpush1.bf16.msra.mxu0 0
        %486 = vmatprep.subr.bf16.mxu0 0
        %487 = vmatpush1.bf16.msra.mxu0 0
        %488 = vmatprep.subr.bf16.mxu0 0
        %489 = vmatpush1.bf16.msra.mxu0 0
        %490 = vmatprep.subr.bf16.mxu0 0
        %491 = vmatpush1.bf16.msra.mxu0 0
        %492 = vmatprep.mubr.bf16.mxu0 0
        %493 = vmatmul.mubr.bf16.gmra.mrb[0].mxu0 %v437
        %v494 = vpop.f32.mrb[0].mxu0
        %v495 = vadd.f32 %v422, %v494
        %v496 = vpop.f32.mrb[0].mxu0
        %v497 = vpop.f32.mrb[0].mxu0
        %v498 = vadd.f32 %v422, %v497
        %v499 = vpop.f32.mrb[0].mxu0
        %500 = vmatprep.mubr.bf16.mxu0 0
        %501 = vmatmul.mubr.bf16.gmra.mrb[0].mxu0 %v440
        %v502 = vpop.f32.mrb[0].mxu0
        %v503 = vadd.f32 %v422, %v502
        %v504 = vpop.f32.mrb[0].mxu0
        %v505 = vpop.f32.mrb[0].mxu0
        %v506 = vadd.f32 %v422, %v505
        %v507 = vpop.f32.mrb[0].mxu0
        %508 = vmatprep.mubr.bf16.mxu0 0
        %509 = vmatmul.mubr.bf16.gmra.mrb[0].mxu0 %v443
        %v510 = vpop.f32.mrb[0].mxu0
        %v511 = vadd.f32 %v422, %v510
        %v512 = vpop.f32.mrb[0].mxu0
        %v513 = vpop.f32.mrb[0].mxu0
        %v514 = vadd.f32 %v422, %v513
        %v515 = vpop.f32.mrb[0].mxu0
        %516 = vmatprep.mubr.bf16.mxu0 0
        %517 = vmatmul.mubr.bf16.gmra.mrb[0].mxu0 %v446
        %v518 = vpop.f32.mrb[0].mxu0
        %v519 = vadd.f32 %v422, %v518
        %v520 = vpop.f32.mrb[0].mxu0
        %v521 = vpop.f32.mrb[0].mxu0
        %v522 = vadd.f32 %v422, %v521
        %v523 = vpop.f32.mrb[0].mxu0
        %524 = vmatprep.mubr.bf16.mxu0 0
        %525 = vmatmul.mubr.bf16.gmra.mrb[0].mxu0 %v449
        %v526 = vpop.f32.mrb[0].mxu0
        %v527 = vadd.f32 %v422, %v526
        %v528 = vpop.f32.mrb[0].mxu0
        %v529 = vpop.f32.mrb[0].mxu0
        %v530 = vadd.f32 %v422, %v529
        %v531 = vpop.f32.mrb[0].mxu0
        %532 = vmatprep.mubr.bf16.mxu0 0
        %533 = vmatmul.mubr.bf16.gmra.mrb[0].mxu0 %v452
        %v534 = vpop.f32.mrb[0].mxu0
        %v535 = vadd.f32 %v422, %v534
        %v536 = vpop.f32.mrb[0].mxu0
        %v537 = vpop.f32.mrb[0].mxu0
        %v538 = vadd.f32 %v422, %v537
        %v539 = vpop.f32.mrb[0].mxu0
        %540 = vmatprep.mubr.bf16.mxu0 0
        %541 = vmatmul.mubr.bf16.gmra.mrb[0].mxu0 %v455
        %v542 = vpop.f32.mrb[0].mxu0
        %v543 = vadd.f32 %v422, %v542
        %v544 = vpop.f32.mrb[0].mxu0
        %v545 = vpop.f32.mrb[0].mxu0
        %v546 = vadd.f32 %v422, %v545
        %v547 = vpop.f32.mrb[0].mxu0
        %548 = vmatprep.mubr.bf16.mxu0 0
        %549 = vmatmul.mubr.bf16.gmra.mrb[0].mxu0 %v458
        %v550 = vpop.f32.mrb[0].mxu0
        %v551 = vadd.f32 %v422, %v550
        %v552 = vpop.f32.mrb[0].mxu0
        %v553 = vpop.f32.mrb[0].mxu0
        %v554 = vadd.f32 %v422, %v553
        %v555 = vpop.f32.mrb[0].mxu0
        %556 = vdwg.mxu0
        %v557 = vpack.c.bf16 %v498, %v495
        %v558 = vpack.c.bf16 %v506, %v503
        %v559 = vpack.c.bf16 %v514, %v511
        %v560 = vpack.c.bf16 %v522, %v519
        %v561 = vpack.c.bf16 %v530, %v527
        %v562 = vpack.c.bf16 %v538, %v535
        %v563 = vpack.c.bf16 %v546, %v543
        %v564 = vpack.c.bf16 %v554, %v551
        %565 = vst.msk [vmem:[#allocation5] sm:$0xff] %vm372, %v557
        %566 = vst.msk [vmem:[#allocation5 + $0x8] sm:$0xff] %vm372, %v558
        %567 = vst.msk [vmem:[#allocation5 + $0x10] sm:$0xff] %vm372, %v559
        %568 = vst.msk [vmem:[#allocation5 + $0x18] sm:$0xff] %vm372, %v560
        %569 = vst.msk [vmem:[#allocation5 + $0x20] sm:$0xff] %vm372, %v561
        %570 = vst.msk [vmem:[#allocation5 + $0x28] sm:$0xff] %vm372, %v562
        %571 = vst.msk [vmem:[#allocation5 + $0x30] sm:$0xff] %vm372, %v563
        %572 = vst.msk [vmem:[#allocation5 + $0x38] sm:$0xff] %vm372, %v564
      $region48: #{tpu_custom_call.1} parent=43 // pred_fallthru
        _
      %v573 = vld [vmem:[%s322] sm:$0xf]
      %v574 = vld [vmem:[%s322 + $0x4] sm:$0xf]
      %v575 = vld [vmem:[%s322 + $0x8] sm:$0xf]
      %v576 = vld [vmem:[%s322 + $0xc] sm:$0xf]
      %v577 = vld [vmem:[%s322 + $0x10] sm:$0xf]
      %v578 = vld [vmem:[%s322 + $0x14] sm:$0xf]
      %v579 = vld [vmem:[%s322 + $0x18] sm:$0xf]
      %v580 = vld [vmem:[%s322 + $0x1c] sm:$0xf]
      %v581 = vld [vmem:[%s322 + $0x20] sm:$0xf]
      %v582 = vld [vmem:[%s322 + $0x24] sm:$0xf]
      %v583 = vld [vmem:[%s322 + $0x28] sm:$0xf]
      %v584 = vld [vmem:[%s322 + $0x2c] sm:$0xf]
      %v585 = vld [vmem:[%s322 + $0x30] sm:$0xf]
      %v586 = vld [vmem:[%s322 + $0x34] sm:$0xf]
      %v587 = vld [vmem:[%s322 + $0x38] sm:$0xf]
      %v588 = vld [vmem:[%s322 + $0x3c] sm:$0xf]
      %v589 = vld [vmem:[#allocation5] sm:$0xff]
      %v590 = vld [vmem:[#allocation5 + $0x8] sm:$0xff]
      %v591 = vld [vmem:[#allocation5 + $0x10] sm:$0xff]
      %v592 = vld [vmem:[#allocation5 + $0x18] sm:$0xff]
      %v593 = vld [vmem:[#allocation5 + $0x20] sm:$0xff]
      %v594 = vld [vmem:[#allocation5 + $0x28] sm:$0xff]
      %v595 = vld [vmem:[#allocation5 + $0x30] sm:$0xff]
      %v596 = vld [vmem:[#allocation5 + $0x38] sm:$0xff]
      %v613 = vunpack.c.l.b16 %v573
      %v614 = vunpack.c.l.b16 %v574
      %v615 = vunpack.c.l.b16 %v575
      %v616 = vunpack.c.l.b16 %v576
      %v617 = vunpack.c.l.b16 %v577
      %v618 = vunpack.c.l.b16 %v578
      %v619 = vunpack.c.l.b16 %v579
      %v620 = vunpack.c.l.b16 %v580
      %v621 = vunpack.c.l.b16 %v581
      %v622 = vunpack.c.l.b16 %v582
      %v623 = vunpack.c.l.b16 %v583
      %v624 = vunpack.c.l.b16 %v584
      %v625 = vunpack.c.l.b16 %v585
      %v626 = vunpack.c.l.b16 %v586
      %v627 = vunpack.c.l.b16 %v587
      %v628 = vunpack.c.l.b16 %v588
      %v629 = vpack.c.b16 %v614, %v613
      %v630 = vpack.c.b16 %v616, %v615
      %v631 = vpack.c.b16 %v618, %v617
      %v632 = vpack.c.b16 %v620, %v619
      %v633 = vpack.c.b16 %v622, %v621
      %v634 = vpack.c.b16 %v624, %v623
      %v635 = vpack.c.b16 %v626, %v625
      %v636 = vpack.c.b16 %v628, %v627
      %vm637 = vcmask 261120
      %v639 = vsel %vm637, %v589, 0
      %v642 = vsel %vm637, %v590, 0
      %v645 = vsel %vm637, %v591, 0
      %v648 = vsel %vm637, %v592, 0
      %v651 = vsel %vm637, %v593, 0
      %v654 = vsel %vm637, %v594, 0
      %v657 = vsel %vm637, %v595, 0
      %v660 = vsel %vm637, %v596, 0
      %v663 = vsel %vm637, %v629, 0
      %v666 = vsel %vm637, %v630, 0
      %v669 = vsel %vm637, %v631, 0
      %v672 = vsel %vm637, %v632, 0
      %v675 = vsel %vm637, %v633, 0
      %v678 = vsel %vm637, %v634, 0
      %v681 = vsel %vm637, %v635, 0
      %v684 = vsel %vm637, %v636, 0
      %686 = vmatprep.subr.bf16.mxu0 0
      %687 = vmatpush1.bf16.xpose.msra.mxu0 %v663
      %688 = vmatprep.subr.bf16.mxu0 0
      %689 = vmatpush1.bf16.xpose.msra.mxu0 %v666
      %690 = vmatprep.subr.bf16.mxu0 0
      %691 = vmatpush1.bf16.xpose.msra.mxu0 %v669
      %692 = vmatprep.subr.bf16.mxu0 0
      %693 = vmatpush1.bf16.xpose.msra.mxu0 %v672
      %694 = vmatprep.subr.bf16.mxu0 0
      %695 = vmatpush1.bf16.xpose.msra.mxu0 %v675
      %696 = vmatprep.subr.bf16.mxu0 0
      %697 = vmatpush1.bf16.xpose.msra.mxu0 %v678
      %698 = vmatprep.subr.bf16.mxu0 0
      %699 = vmatpush1.bf16.xpose.msra.mxu0 %v681
      %700 = vmatprep.subr.bf16.mxu0 0
      %701 = vmatpush1.bf16.xpose.msra.mxu0 %v684
      %702 = vmatprep.subr.bf16.mxu0 0
      %703 = vmatpush1.bf16.xpose.msra.mxu0 0
      %704 = vmatprep.subr.bf16.mxu0 0
      %705 = vmatpush1.bf16.xpose.msra.mxu0 0
      %706 = vmatprep.subr.bf16.mxu0 0
      %707 = vmatpush1.bf16.xpose.msra.mxu0 0
      %708 = vmatprep.subr.bf16.mxu0 0
      %709 = vmatpush1.bf16.xpose.msra.mxu0 0
      %710 = vmatprep.subr.bf16.mxu0 0
      %711 = vmatpush1.bf16.xpose.msra.mxu0 0
      %712 = vmatprep.subr.bf16.mxu0 0
      %713 = vmatpush1.bf16.xpose.msra.mxu0 0
      %714 = vmatprep.subr.bf16.mxu0 0
      %715 = vmatpush1.bf16.xpose.msra.mxu0 0
      %716 = vmatprep.subr.bf16.mxu0 0
      %717 = vmatpush1.bf16.xpose.msra.mxu0 0
      %718 = vmatprep.mubr.bf16.mxu0 0
      %719 = vmatmul.mubr.bf16.gmra.mrb[0].mxu0 %v639
      %v720 = vpop.f32.mrb[0].mxu0
      %v721 = vadd.f32 0.0, %v720
      %v722 = vpop.f32.mrb[0].mxu0
      %v723 = vpop.f32.mrb[0].mxu0
      %v724 = vadd.f32 0.0, %v723
      %v725 = vpop.f32.mrb[0].mxu0
      %726 = vmatprep.mubr.bf16.mxu0 0
      %727 = vmatmul.mubr.bf16.gmra.mrb[0].mxu0 %v642
      %v728 = vpop.f32.mrb[0].mxu0
      %v729 = vadd.f32 0.0, %v728
      %v730 = vpop.f32.mrb[0].mxu0
      %v731 = vpop.f32.mrb[0].mxu0
      %v732 = vadd.f32 0.0, %v731
      %v733 = vpop.f32.mrb[0].mxu0
      %734 = vmatprep.mubr.bf16.mxu0 0
      %735 = vmatmul.mubr.bf16.gmra.mrb[0].mxu0 %v645
      %v736 = vpop.f32.mrb[0].mxu0
      %v737 = vadd.f32 0.0, %v736
      %v738 = vpop.f32.mrb[0].mxu0
      %v739 = vpop.f32.mrb[0].mxu0
      %v740 = vadd.f32 0.0, %v739
      %v741 = vpop.f32.mrb[0].mxu0
      %742 = vmatprep.mubr.bf16.mxu0 0
      %743 = vmatmul.mubr.bf16.gmra.mrb[0].mxu0 %v648
      %v744 = vpop.f32.mrb[0].mxu0
      %v745 = vadd.f32 0.0, %v744
      %v746 = vpop.f32.mrb[0].mxu0
      %v747 = vpop.f32.mrb[0].mxu0
      %v748 = vadd.f32 0.0, %v747
      %v749 = vpop.f32.mrb[0].mxu0
      %750 = vmatprep.mubr.bf16.mxu0 0
      %751 = vmatmul.mubr.bf16.gmra.mrb[0].mxu0 %v651
      %v752 = vpop.f32.mrb[0].mxu0
      %v753 = vadd.f32 0.0, %v752
      %v754 = vpop.f32.mrb[0].mxu0
      %v755 = vpop.f32.mrb[0].mxu0
      %v756 = vadd.f32 0.0, %v755
      %v757 = vpop.f32.mrb[0].mxu0
      %758 = vmatprep.mubr.bf16.mxu0 0
      %759 = vmatmul.mubr.bf16.gmra.mrb[0].mxu0 %v654
      %v760 = vpop.f32.mrb[0].mxu0
      %v761 = vadd.f32 0.0, %v760
      %v762 = vpop.f32.mrb[0].mxu0
      %v763 = vpop.f32.mrb[0].mxu0
      %v764 = vadd.f32 0.0, %v763
      %v765 = vpop.f32.mrb[0].mxu0
      %766 = vmatprep.mubr.bf16.mxu0 0
      %767 = vmatmul.mubr.bf16.gmra.mrb[0].mxu0 %v657
      %v768 = vpop.f32.mrb[0].mxu0
      %v769 = vadd.f32 0.0, %v768
      %v770 = vpop.f32.mrb[0].mxu0
      %v771 = vpop.f32.mrb[0].mxu0
      %v772 = vadd.f32 0.0, %v771
      %v773 = vpop.f32.mrb[0].mxu0
      %774 = vmatprep.mubr.bf16.mxu0 0
      %775 = vmatmul.mubr.bf16.gmra.mrb[0].mxu0 %v660
      %v776 = vpop.f32.mrb[0].mxu0
      %v777 = vadd.f32 0.0, %v776
      %v778 = vpop.f32.mrb[0].mxu0
      %v779 = vpop.f32.mrb[0].mxu0
      %v780 = vadd.f32 0.0, %v779
      %v781 = vpop.f32.mrb[0].mxu0
      %782 = vdwg.mxu0
      %v783 = vld [vmem:[%s4] sm:$0xf]
      %v784 = vld [vmem:[%s4 + $0x4] sm:$0xf]
      %v785 = vld [vmem:[%s4 + $0x8] sm:$0xf]
      %v786 = vld [vmem:[%s4 + $0xc] sm:$0xf]
      %v787 = vld [vmem:[%s5] sm:$0x1]
      %v789 = vlaneseq
      %v790 = vshrl.u32 %v789, 7
      %v791 = vsub.s32 0, %v790
      %v792 = vrot.slane %v787, %v791
      %v798 = vunpack.c.l.b16 %v783
      %v799 = vunpack.c.l.b16 %v784
      %v800 = vunpack.c.l.b16 %v785
      %v801 = vunpack.c.l.b16 %v786
      %v802 = vpack.c.b16 %v799, %v798
      %v803 = vpack.c.b16 %v801, %v800
      %806 = vmatprep.subr.bf16.mxu0 0
      %807 = vmatpush1.bf16.msra.mxu0 %v802
      %808 = vmatprep.subr.bf16.mxu0 0
      %809 = vmatpush1.bf16.msra.mxu0 %v803
      %810 = vmatprep.subr.bf16.mxu0 0
      %811 = vmatpush1.bf16.msra.mxu0 0
      %812 = vmatprep.subr.bf16.mxu0 0
      %813 = vmatpush1.bf16.msra.mxu0 0
      %814 = vmatprep.subr.bf16.mxu0 0
      %815 = vmatpush1.bf16.msra.mxu0 0
      %816 = vmatprep.subr.bf16.mxu0 0
      %817 = vmatpush1.bf16.msra.mxu0 0
      %818 = vmatprep.subr.bf16.mxu0 0
      %819 = vmatpush1.bf16.msra.mxu0 0
      %820 = vmatprep.subr.bf16.mxu0 0
      %821 = vmatpush1.bf16.msra.mxu0 0
      %822 = vmatprep.subr.bf16.mxu0 0
      %823 = vmatpush1.bf16.msra.mxu0 0
      %824 = vmatprep.subr.bf16.mxu0 0
      %825 = vmatpush1.bf16.msra.mxu0 0
      %826 = vmatprep.subr.bf16.mxu0 0
      %827 = vmatpush1.bf16.msra.mxu0 0
      %828 = vmatprep.subr.bf16.mxu0 0
      %829 = vmatpush1.bf16.msra.mxu0 0
      %830 = vmatprep.subr.bf16.mxu0 0
      %831 = vmatpush1.bf16.msra.mxu0 0
      %832 = vmatprep.subr.bf16.mxu0 0
      %833 = vmatpush1.bf16.msra.mxu0 0
      %834 = vmatprep.subr.bf16.mxu0 0
      %835 = vmatpush1.bf16.msra.mxu0 0
      %836 = vmatprep.subr.bf16.mxu0 0
      %837 = vmatpush1.bf16.msra.mxu0 0
      %838 = vmatprep.mubr.bf16.mxu0 0
      %839 = vmatmul.mubr.bf16.gmra.mrb[0].mxu0 %v663
      %v840 = vpop.f32.mrb[0].mxu0
      %v841 = vadd.f32 %v792, %v840
      %v842 = vpop.f32.mrb[0].mxu0
      %v843 = vpop.f32.mrb[0].mxu0
      %v844 = vadd.f32 %v792, %v843
      %v845 = vpop.f32.mrb[0].mxu0
      %846 = vmatprep.mubr.bf16.mxu0 0
      %847 = vmatmul.mubr.bf16.gmra.mrb[0].mxu0 %v666
      %v848 = vpop.f32.mrb[0].mxu0
      %v849 = vadd.f32 %v792, %v848
      %v850 = vpop.f32.mrb[0].mxu0
      %v851 = vpop.f32.mrb[0].mxu0
      %v852 = vadd.f32 %v792, %v851
      %v853 = vpop.f32.mrb[0].mxu0
      %854 = vmatprep.mubr.bf16.mxu0 0
      %855 = vmatmul.mubr.bf16.gmra.mrb[0].mxu0 %v669
      %v856 = vpop.f32.mrb[0].mxu0
      %v857 = vadd.f32 %v792, %v856
      %v858 = vpop.f32.mrb[0].mxu0
      %v859 = vpop.f32.mrb[0].mxu0
      %v860 = vadd.f32 %v792, %v859
      %v861 = vpop.f32.mrb[0].mxu0
      %862 = vmatprep.mubr.bf16.mxu0 0
      %863 = vmatmul.mubr.bf16.gmra.mrb[0].mxu0 %v672
      %v864 = vpop.f32.mrb[0].mxu0
      %v865 = vadd.f32 %v792, %v864
      %v866 = vpop.f32.mrb[0].mxu0
      %v867 = vpop.f32.mrb[0].mxu0
      %v868 = vadd.f32 %v792, %v867
      %v869 = vpop.f32.mrb[0].mxu0
      %870 = vmatprep.mubr.bf16.mxu0 0
      %871 = vmatmul.mubr.bf16.gmra.mrb[0].mxu0 %v675
      %v872 = vpop.f32.mrb[0].mxu0
      %v873 = vadd.f32 %v792, %v872
      %v874 = vpop.f32.mrb[0].mxu0
      %v875 = vpop.f32.mrb[0].mxu0
      %v876 = vadd.f32 %v792, %v875
      %v877 = vpop.f32.mrb[0].mxu0
      %878 = vmatprep.mubr.bf16.mxu0 0
      %879 = vmatmul.mubr.bf16.gmra.mrb[0].mxu0 %v678
      %v880 = vpop.f32.mrb[0].mxu0
      %v881 = vadd.f32 %v792, %v880
      %v882 = vpop.f32.mrb[0].mxu0
      %v883 = vpop.f32.mrb[0].mxu0
      %v884 = vadd.f32 %v792, %v883
      %v885 = vpop.f32.mrb[0].mxu0
      %886 = vmatprep.mubr.bf16.mxu0 0
      %887 = vmatmul.mubr.bf16.gmra.mrb[0].mxu0 %v681
      %v888 = vpop.f32.mrb[0].mxu0
      %v889 = vadd.f32 %v792, %v888
      %v890 = vpop.f32.mrb[0].mxu0
      %v891 = vpop.f32.mrb[0].mxu0
      %v892 = vadd.f32 %v792, %v891
      %v893 = vpop.f32.mrb[0].mxu0
      %894 = vmatprep.mubr.bf16.mxu0 0
      %895 = vmatmul.mubr.bf16.gmra.mrb[0].mxu0 %v684
      %v896 = vpop.f32.mrb[0].mxu0
      %v897 = vadd.f32 %v792, %v896
      %v898 = vpop.f32.mrb[0].mxu0
      %v899 = vpop.f32.mrb[0].mxu0
      %v900 = vadd.f32 %v792, %v899
      %v901 = vpop.f32.mrb[0].mxu0
      %902 = vdwg.mxu0
      %v903 = vld [vmem:[#allocation2] sm:$0xff]
      %v904 = vld [vmem:[#allocation2 + $0x8] sm:$0xff]
      %v905 = vld [vmem:[#allocation2 + $0x10] sm:$0xff]
      %v906 = vld [vmem:[#allocation2 + $0x18] sm:$0xff]
      %v907 = vld [vmem:[#allocation2 + $0x20] sm:$0xff]
      %v908 = vld [vmem:[#allocation2 + $0x28] sm:$0xff]
      %v909 = vld [vmem:[#allocation2 + $0x30] sm:$0xff]
      %v910 = vld [vmem:[#allocation2 + $0x38] sm:$0xff]
      %v911 = vld [vmem:[#allocation2 + $0x40] sm:$0xff]
      %v912 = vld [vmem:[#allocation2 + $0x48] sm:$0xff]
      %v913 = vld [vmem:[#allocation2 + $0x50] sm:$0xff]
      %v914 = vld [vmem:[#allocation2 + $0x58] sm:$0xff]
      %v915 = vld [vmem:[#allocation2 + $0x60] sm:$0xff]
      %v916 = vld [vmem:[#allocation2 + $0x68] sm:$0xff]
      %v917 = vld [vmem:[#allocation2 + $0x70] sm:$0xff]
      %v918 = vld [vmem:[#allocation2 + $0x78] sm:$0xff]
      %919 = vmax.xlane.f32.xlu0 %v721
      %v920 = vpop.xlane.xlu0 %919
      %921 = vmax.xlane.f32.xlu0 %v724
      %v922 = vpop.xlane.xlu0 %921
      %923 = vmax.xlane.f32.xlu0 %v729
      %v924 = vpop.xlane.xlu0 %923
      %925 = vmax.xlane.f32.xlu0 %v732
      %v926 = vpop.xlane.xlu0 %925
      %927 = vmax.xlane.f32.xlu0 %v737
      %v928 = vpop.xlane.xlu0 %927
      %929 = vmax.xlane.f32.xlu0 %v740
      %v930 = vpop.xlane.xlu0 %929
      %931 = vmax.xlane.f32.xlu0 %v745
      %v932 = vpop.xlane.xlu0 %931
      %933 = vmax.xlane.f32.xlu0 %v748
      %v934 = vpop.xlane.xlu0 %933
      %935 = vmax.xlane.f32.xlu0 %v753
      %v936 = vpop.xlane.xlu0 %935
      %937 = vmax.xlane.f32.xlu0 %v756
      %v938 = vpop.xlane.xlu0 %937
      %939 = vmax.xlane.f32.xlu0 %v761
      %v940 = vpop.xlane.xlu0 %939
      %941 = vmax.xlane.f32.xlu0 %v764
      %v942 = vpop.xlane.xlu0 %941
      %943 = vmax.xlane.f32.xlu0 %v769
      %v944 = vpop.xlane.xlu0 %943
      %945 = vmax.xlane.f32.xlu0 %v772
      %v946 = vpop.xlane.xlu0 %945
      %947 = vmax.xlane.f32.xlu0 %v777
      %v948 = vpop.xlane.xlu0 %947
      %949 = vmax.xlane.f32.xlu0 %v780
      %v950 = vpop.xlane.xlu0 %949
      %v951 = vmax.f32 %v903, %v920
      %v952 = vmax.f32 %v904, %v922
      %v953 = vmax.f32 %v905, %v924
      %v954 = vmax.f32 %v906, %v926
      %v955 = vmax.f32 %v907, %v928
      %v956 = vmax.f32 %v908, %v930
      %v957 = vmax.f32 %v909, %v932
      %v958 = vmax.f32 %v910, %v934
      %v959 = vmax.f32 %v911, %v936
      %v960 = vmax.f32 %v912, %v938
      %v961 = vmax.f32 %v913, %v940
      %v962 = vmax.f32 %v914, %v942
      %v963 = vmax.f32 %v915, %v944
      %v964 = vmax.f32 %v916, %v946
      %v965 = vmax.f32 %v917, %v948
      %v966 = vmax.f32 %v918, %v950
      %v967 = vsub.f32 %v903, %v951
      %v968 = vsub.f32 %v904, %v952
      %v969 = vsub.f32 %v905, %v953
      %v970 = vsub.f32 %v906, %v954
      %v971 = vsub.f32 %v907, %v955
      %v972 = vsub.f32 %v908, %v956
      %v973 = vsub.f32 %v909, %v957
      %v974 = vsub.f32 %v910, %v958
      %v975 = vsub.f32 %v911, %v959
      %v976 = vsub.f32 %v912, %v960
      %v977 = vsub.f32 %v913, %v961
      %v978 = vsub.f32 %v914, %v962
      %v979 = vsub.f32 %v915, %v963
      %v980 = vsub.f32 %v916, %v964
      %v981 = vsub.f32 %v917, %v965
      %v982 = vsub.f32 %v918, %v966
      %v983 = vmul.f32 %v967, 1.442695
      %v984 = vpow.pop %v983
      %v985 = vmul.f32 %v968, 1.442695
      %v986 = vpow.pop %v985
      %v987 = vmul.f32 %v969, 1.442695
      %v988 = vpow.pop %v987
      %v989 = vmul.f32 %v970, 1.442695
      %v990 = vpow.pop %v989
      %v991 = vmul.f32 %v971, 1.442695
      %v992 = vpow.pop %v991
      %v993 = vmul.f32 %v972, 1.442695
      %v994 = vpow.pop %v993
      %v995 = vmul.f32 %v973, 1.442695
      %v996 = vpow.pop %v995
      %v997 = vmul.f32 %v974, 1.442695
      %v998 = vpow.pop %v997
      %v999 = vmul.f32 %v975, 1.442695
      %v1000 = vpow.pop %v999
      %v1001 = vmul.f32 %v976, 1.442695
      %v1002 = vpow.pop %v1001
      %v1003 = vmul.f32 %v977, 1.442695
      %v1004 = vpow.pop %v1003
      %v1005 = vmul.f32 %v978, 1.442695
      %v1006 = vpow.pop %v1005
      %v1007 = vmul.f32 %v979, 1.442695
      %v1008 = vpow.pop %v1007
      %v1009 = vmul.f32 %v980, 1.442695
      %v1010 = vpow.pop %v1009
      %v1011 = vmul.f32 %v981, 1.442695
      %v1012 = vpow.pop %v1011
      %v1013 = vmul.f32 %v982, 1.442695
      %v1014 = vpow.pop %v1013
      %1016 = vset.pattern.permute.xlu0 0
      %1017 = vperm.xlu0 %1016, %v951
      %v1018 = vpop.permute.xlu0 %1017
      %1021 = vset.pattern.permute.xlu0 0
      %1022 = vperm.xlu0 %1021, %v952
      %v1023 = vpop.permute.xlu0 %1022
      %1026 = vset.pattern.permute.xlu0 0
      %1027 = vperm.xlu0 %1026, %v953
      %v1028 = vpop.permute.xlu0 %1027
      %1031 = vset.pattern.permute.xlu0 0
      %1032 = vperm.xlu0 %1031, %v954
      %v1033 = vpop.permute.xlu0 %1032
      %1036 = vset.pattern.permute.xlu0 0
      %1037 = vperm.xlu0 %1036, %v955
      %v1038 = vpop.permute.xlu0 %1037
      %1041 = vset.pattern.permute.xlu0 0
      %1042 = vperm.xlu0 %1041, %v956
      %v1043 = vpop.permute.xlu0 %1042
      %1046 = vset.pattern.permute.xlu0 0
      %1047 = vperm.xlu0 %1046, %v957
      %v1048 = vpop.permute.xlu0 %1047
      %1051 = vset.pattern.permute.xlu0 0
      %1052 = vperm.xlu0 %1051, %v958
      %v1053 = vpop.permute.xlu0 %1052
      %1056 = vset.pattern.permute.xlu0 0
      %1057 = vperm.xlu0 %1056, %v959
      %v1058 = vpop.permute.xlu0 %1057
      %1061 = vset.pattern.permute.xlu0 0
      %1062 = vperm.xlu0 %1061, %v960
      %v1063 = vpop.permute.xlu0 %1062
      %1066 = vset.pattern.permute.xlu0 0
      %1067 = vperm.xlu0 %1066, %v961
      %v1068 = vpop.permute.xlu0 %1067
      %1071 = vset.pattern.permute.xlu0 0
      %1072 = vperm.xlu0 %1071, %v962
      %v1073 = vpop.permute.xlu0 %1072
      %1076 = vset.pattern.permute.xlu0 0
      %1077 = vperm.xlu0 %1076, %v963
      %v1078 = vpop.permute.xlu0 %1077
      %1081 = vset.pattern.permute.xlu0 0
      %1082 = vperm.xlu0 %1081, %v964
      %v1083 = vpop.permute.xlu0 %1082
      %1086 = vset.pattern.permute.xlu0 0
      %1087 = vperm.xlu0 %1086, %v965
      %v1088 = vpop.permute.xlu0 %1087
      %1091 = vset.pattern.permute.xlu0 0
      %1092 = vperm.xlu0 %1091, %v966
      %v1093 = vpop.permute.xlu0 %1092
      %v1095 = vsub.f32 %v721, %v1018
      %v1096 = vsub.f32 %v724, %v1023
      %v1097 = vsub.f32 %v729, %v1028
      %v1098 = vsub.f32 %v732, %v1033
      %v1099 = vsub.f32 %v737, %v1038
      %v1100 = vsub.f32 %v740, %v1043
      %v1101 = vsub.f32 %v745, %v1048
      %v1102 = vsub.f32 %v748, %v1053
      %v1103 = vsub.f32 %v753, %v1058
      %v1104 = vsub.f32 %v756, %v1063
      %v1105 = vsub.f32 %v761, %v1068
      %v1106 = vsub.f32 %v764, %v1073
      %v1107 = vsub.f32 %v769, %v1078
      %v1108 = vsub.f32 %v772, %v1083
      %v1109 = vsub.f32 %v777, %v1088
      %v1110 = vsub.f32 %v780, %v1093
      %v1111 = vmul.f32 %v1095, 1.442695
      %v1112 = vpow.pop %v1111
      %v1113 = vmul.f32 %v1096, 1.442695
      %v1114 = vpow.pop %v1113
      %v1115 = vmul.f32 %v1097, 1.442695
      %v1116 = vpow.pop %v1115
      %v1117 = vmul.f32 %v1098, 1.442695
      %v1118 = vpow.pop %v1117
      %v1119 = vmul.f32 %v1099, 1.442695
      %v1120 = vpow.pop %v1119
      %v1121 = vmul.f32 %v1100, 1.442695
      %v1122 = vpow.pop %v1121
      %v1123 = vmul.f32 %v1101, 1.442695
      %v1124 = vpow.pop %v1123
      %v1125 = vmul.f32 %v1102, 1.442695
      %v1126 = vpow.pop %v1125
      %v1127 = vmul.f32 %v1103, 1.442695
      %v1128 = vpow.pop %v1127
      %v1129 = vmul.f32 %v1104, 1.442695
      %v1130 = vpow.pop %v1129
      %v1131 = vmul.f32 %v1105, 1.442695
      %v1132 = vpow.pop %v1131
      %v1133 = vmul.f32 %v1106, 1.442695
      %v1134 = vpow.pop %v1133
      %v1135 = vmul.f32 %v1107, 1.442695
      %v1136 = vpow.pop %v1135
      %v1137 = vmul.f32 %v1108, 1.442695
      %v1138 = vpow.pop %v1137
      %v1139 = vmul.f32 %v1109, 1.442695
      %v1140 = vpow.pop %v1139
      %v1141 = vmul.f32 %v1110, 1.442695
      %v1142 = vpow.pop %v1141
      %v1143 = vld [vmem:[#allocation3] sm:$0xff]
      %v1144 = vld [vmem:[#allocation3 + $0x8] sm:$0xff]
      %v1145 = vld [vmem:[#allocation3 + $0x10] sm:$0xff]
      %v1146 = vld [vmem:[#allocation3 + $0x18] sm:$0xff]
      %v1147 = vld [vmem:[#allocation3 + $0x20] sm:$0xff]
      %v1148 = vld [vmem:[#allocation3 + $0x28] sm:$0xff]
      %v1149 = vld [vmem:[#allocation3 + $0x30] sm:$0xff]
      %v1150 = vld [vmem:[#allocation3 + $0x38] sm:$0xff]
      %v1151 = vld [vmem:[#allocation3 + $0x40] sm:$0xff]
      %v1152 = vld [vmem:[#allocation3 + $0x48] sm:$0xff]
      %v1153 = vld [vmem:[#allocation3 + $0x50] sm:$0xff]
      %v1154 = vld [vmem:[#allocation3 + $0x58] sm:$0xff]
      %v1155 = vld [vmem:[#allocation3 + $0x60] sm:$0xff]
      %v1156 = vld [vmem:[#allocation3 + $0x68] sm:$0xff]
      %v1157 = vld [vmem:[#allocation3 + $0x70] sm:$0xff]
      %v1158 = vld [vmem:[#allocation3 + $0x78] sm:$0xff]
      %v1159 = vmul.f32 %v984, %v1143
      %v1160 = vmul.f32 %v986, %v1144
      %v1161 = vmul.f32 %v988, %v1145
      %v1162 = vmul.f32 %v990, %v1146
      %v1163 = vmul.f32 %v992, %v1147
      %v1164 = vmul.f32 %v994, %v1148
      %v1165 = vmul.f32 %v996, %v1149
      %v1166 = vmul.f32 %v998, %v1150
      %v1167 = vmul.f32 %v1000, %v1151
      %v1168 = vmul.f32 %v1002, %v1152
      %v1169 = vmul.f32 %v1004, %v1153
      %v1170 = vmul.f32 %v1006, %v1154
      %v1171 = vmul.f32 %v1008, %v1155
      %v1172 = vmul.f32 %v1010, %v1156
      %v1173 = vmul.f32 %v1012, %v1157
      %v1174 = vmul.f32 %v1014, %v1158
      %1175 = vadd.xlane.f32.xlu0 %v1112
      %v1176 = vpop.xlane.xlu0 %1175
      %1177 = vadd.xlane.f32.xlu0 %v1114
      %v1178 = vpop.xlane.xlu0 %1177
      %1179 = vadd.xlane.f32.xlu0 %v1116
      %v1180 = vpop.xlane.xlu0 %1179
      %1181 = vadd.xlane.f32.xlu0 %v1118
      %v1182 = vpop.xlane.xlu0 %1181
      %1183 = vadd.xlane.f32.xlu0 %v1120
      %v1184 = vpop.xlane.xlu0 %1183
      %1185 = vadd.xlane.f32.xlu0 %v1122
      %v1186 = vpop.xlane.xlu0 %1185
      %1187 = vadd.xlane.f32.xlu0 %v1124
      %v1188 = vpop.xlane.xlu0 %1187
      %1189 = vadd.xlane.f32.xlu0 %v1126
      %v1190 = vpop.xlane.xlu0 %1189
      %1191 = vadd.xlane.f32.xlu0 %v1128
      %v1192 = vpop.xlane.xlu0 %1191
      %1193 = vadd.xlane.f32.xlu0 %v1130
      %v1194 = vpop.xlane.xlu0 %1193
      %1195 = vadd.xlane.f32.xlu0 %v1132
      %v1196 = vpop.xlane.xlu0 %1195
      %1197 = vadd.xlane.f32.xlu0 %v1134
      %v1198 = vpop.xlane.xlu0 %1197
      %1199 = vadd.xlane.f32.xlu0 %v1136
      %v1200 = vpop.xlane.xlu0 %1199
      %1201 = vadd.xlane.f32.xlu0 %v1138
      %v1202 = vpop.xlane.xlu0 %1201
      %1203 = vadd.xlane.f32.xlu0 %v1140
      %v1204 = vpop.xlane.xlu0 %1203
      %1205 = vadd.xlane.f32.xlu0 %v1142
      %v1206 = vpop.xlane.xlu0 %1205
      %v1207 = vadd.f32 %v1159, %v1176
      %v1208 = vadd.f32 %v1160, %v1178
      %v1209 = vadd.f32 %v1161, %v1180
      %v1210 = vadd.f32 %v1162, %v1182
      %v1211 = vadd.f32 %v1163, %v1184
      %v1212 = vadd.f32 %v1164, %v1186
      %v1213 = vadd.f32 %v1165, %v1188
      %v1214 = vadd.f32 %v1166, %v1190
      %v1215 = vadd.f32 %v1167, %v1192
      %v1216 = vadd.f32 %v1168, %v1194
      %v1217 = vadd.f32 %v1169, %v1196
      %v1218 = vadd.f32 %v1170, %v1198
      %v1219 = vadd.f32 %v1171, %v1200
      %v1220 = vadd.f32 %v1172, %v1202
      %v1221 = vadd.f32 %v1173, %v1204
      %v1222 = vadd.f32 %v1174, %v1206
      %vm1223 = vcmask 7168
      %1224 = vst.msk [vmem:[#allocation3] sm:$0xff] %vm1223, %v1207
      %1225 = vst.msk [vmem:[#allocation3 + $0x8] sm:$0xff] %vm1223, %v1208
      %1226 = vst.msk [vmem:[#allocation3 + $0x10] sm:$0xff] %vm1223, %v1209
      %1227 = vst.msk [vmem:[#allocation3 + $0x18] sm:$0xff] %vm1223, %v1210
      %1228 = vst.msk [vmem:[#allocation3 + $0x20] sm:$0xff] %vm1223, %v1211
      %1229 = vst.msk [vmem:[#allocation3 + $0x28] sm:$0xff] %vm1223, %v1212
      %1230 = vst.msk [vmem:[#allocation3 + $0x30] sm:$0xff] %vm1223, %v1213
      %1231 = vst.msk [vmem:[#allocation3 + $0x38] sm:$0xff] %vm1223, %v1214
      %1232 = vst.msk [vmem:[#allocation3 + $0x40] sm:$0xff] %vm1223, %v1215
      %1233 = vst.msk [vmem:[#allocation3 + $0x48] sm:$0xff] %vm1223, %v1216
      %1234 = vst.msk [vmem:[#allocation3 + $0x50] sm:$0xff] %vm1223, %v1217
      %1235 = vst.msk [vmem:[#allocation3 + $0x58] sm:$0xff] %vm1223, %v1218
      %1236 = vst.msk [vmem:[#allocation3 + $0x60] sm:$0xff] %vm1223, %v1219
      %1237 = vst.msk [vmem:[#allocation3 + $0x68] sm:$0xff] %vm1223, %v1220
      %1238 = vst.msk [vmem:[#allocation3 + $0x70] sm:$0xff] %vm1223, %v1221
      %1239 = vst.msk [vmem:[#allocation3 + $0x78] sm:$0xff] %vm1223, %v1222
      %v1240 = vld [vmem:[#allocation4] sm:$0xff]
      %v1241 = vld [vmem:[#allocation4 + $0x8] sm:$0xff]
      %v1242 = vld [vmem:[#allocation4 + $0x10] sm:$0xff]
      %v1243 = vld [vmem:[#allocation4 + $0x18] sm:$0xff]
      %v1244 = vld [vmem:[#allocation4 + $0x20] sm:$0xff]
      %v1245 = vld [vmem:[#allocation4 + $0x28] sm:$0xff]
      %v1246 = vld [vmem:[#allocation4 + $0x30] sm:$0xff]
      %v1247 = vld [vmem:[#allocation4 + $0x38] sm:$0xff]
      %v1248 = vld [vmem:[#allocation4 + $0x40] sm:$0xff]
      %v1249 = vld [vmem:[#allocation4 + $0x48] sm:$0xff]
      %v1250 = vld [vmem:[#allocation4 + $0x50] sm:$0xff]
      %v1251 = vld [vmem:[#allocation4 + $0x58] sm:$0xff]
      %v1252 = vld [vmem:[#allocation4 + $0x60] sm:$0xff]
      %v1253 = vld [vmem:[#allocation4 + $0x68] sm:$0xff]
      %v1254 = vld [vmem:[#allocation4 + $0x70] sm:$0xff]
      %v1255 = vld [vmem:[#allocation4 + $0x78] sm:$0xff]
      %1257 = vset.pattern.permute.xlu0 0
      %1258 = vperm.xlu0 %1257, %v984
      %v1259 = vpop.permute.xlu0 %1258
      %1262 = vset.pattern.permute.xlu0 0
      %1263 = vperm.xlu0 %1262, %v986
      %v1264 = vpop.permute.xlu0 %1263
      %1267 = vset.pattern.permute.xlu0 0
      %1268 = vperm.xlu0 %1267, %v988
      %v1269 = vpop.permute.xlu0 %1268
      %1272 = vset.pattern.permute.xlu0 0
      %1273 = vperm.xlu0 %1272, %v990
      %v1274 = vpop.permute.xlu0 %1273
      %1277 = vset.pattern.permute.xlu0 0
      %1278 = vperm.xlu0 %1277, %v992
      %v1279 = vpop.permute.xlu0 %1278
      %1282 = vset.pattern.permute.xlu0 0
      %1283 = vperm.xlu0 %1282, %v994
      %v1284 = vpop.permute.xlu0 %1283
      %1287 = vset.pattern.permute.xlu0 0
      %1288 = vperm.xlu0 %1287, %v996
      %v1289 = vpop.permute.xlu0 %1288
      %1292 = vset.pattern.permute.xlu0 0
      %1293 = vperm.xlu0 %1292, %v998
      %v1294 = vpop.permute.xlu0 %1293
      %1297 = vset.pattern.permute.xlu0 0
      %1298 = vperm.xlu0 %1297, %v1000
      %v1299 = vpop.permute.xlu0 %1298
      %1302 = vset.pattern.permute.xlu0 0
      %1303 = vperm.xlu0 %1302, %v1002
      %v1304 = vpop.permute.xlu0 %1303
      %1307 = vset.pattern.permute.xlu0 0
      %1308 = vperm.xlu0 %1307, %v1004
      %v1309 = vpop.permute.xlu0 %1308
      %1312 = vset.pattern.permute.xlu0 0
      %1313 = vperm.xlu0 %1312, %v1006
      %v1314 = vpop.permute.xlu0 %1313
      %1317 = vset.pattern.permute.xlu0 0
      %1318 = vperm.xlu0 %1317, %v1008
      %v1319 = vpop.permute.xlu0 %1318
      %1322 = vset.pattern.permute.xlu0 0
      %1323 = vperm.xlu0 %1322, %v1010
      %v1324 = vpop.permute.xlu0 %1323
      %1327 = vset.pattern.permute.xlu0 0
      %1328 = vperm.xlu0 %1327, %v1012
      %v1329 = vpop.permute.xlu0 %1328
      %1332 = vset.pattern.permute.xlu0 0
      %1333 = vperm.xlu0 %1332, %v1014
      %v1334 = vpop.permute.xlu0 %1333
      %v1336 = vmul.f32 %v1259, %v1240
      %v1337 = vmul.f32 %v1264, %v1241
      %v1338 = vmul.f32 %v1269, %v1242
      %v1339 = vmul.f32 %v1274, %v1243
      %v1340 = vmul.f32 %v1279, %v1244
      %v1341 = vmul.f32 %v1284, %v1245
      %v1342 = vmul.f32 %v1289, %v1246
      %v1343 = vmul.f32 %v1294, %v1247
      %v1344 = vmul.f32 %v1299, %v1248
      %v1345 = vmul.f32 %v1304, %v1249
      %v1346 = vmul.f32 %v1309, %v1250
      %v1347 = vmul.f32 %v1314, %v1251
      %v1348 = vmul.f32 %v1319, %v1252
      %v1349 = vmul.f32 %v1324, %v1253
      %v1350 = vmul.f32 %v1329, %v1254
      %v1351 = vmul.f32 %v1334, %v1255
      %v1352 = vpack.c.bf16 %v1114, %v1112
      %v1353 = vpack.c.bf16 %v1118, %v1116
      %v1354 = vpack.c.bf16 %v1122, %v1120
      %v1355 = vpack.c.bf16 %v1126, %v1124
      %v1356 = vpack.c.bf16 %v1130, %v1128
      %v1357 = vpack.c.bf16 %v1134, %v1132
      %v1358 = vpack.c.bf16 %v1138, %v1136
      %v1359 = vpack.c.bf16 %v1142, %v1140
      %v1360 = vpack.c.bf16 %v844, %v841
      %v1361 = vpack.c.bf16 %v852, %v849
      %v1362 = vpack.c.bf16 %v860, %v857
      %v1363 = vpack.c.bf16 %v868, %v865
      %v1364 = vpack.c.bf16 %v876, %v873
      %v1365 = vpack.c.bf16 %v884, %v881
      %v1366 = vpack.c.bf16 %v892, %v889
      %v1367 = vpack.c.bf16 %v900, %v897
      %1368 = vmatprep.subr.bf16.mxu0 0
      %1369 = vmatpush1.bf16.msra.mxu0 %v1360
      %1370 = vmatprep.subr.bf16.mxu0 0
      %1371 = vmatpush1.bf16.msra.mxu0 %v1361
      %1372 = vmatprep.subr.bf16.mxu0 0
      %1373 = vmatpush1.bf16.msra.mxu0 %v1362
      %1374 = vmatprep.subr.bf16.mxu0 0
      %1375 = vmatpush1.bf16.msra.mxu0 %v1363
      %1376 = vmatprep.subr.bf16.mxu0 0
      %1377 = vmatpush1.bf16.msra.mxu0 %v1364
      %1378 = vmatprep.subr.bf16.mxu0 0
      %1379 = vmatpush1.bf16.msra.mxu0 %v1365
      %1380 = vmatprep.subr.bf16.mxu0 0
      %1381 = vmatpush1.bf16.msra.mxu0 %v1366
      %1382 = vmatprep.subr.bf16.mxu0 0
      %1383 = vmatpush1.bf16.msra.mxu0 %v1367
      %1384 = vmatprep.subr.bf16.mxu0 0
      %1385 = vmatpush1.bf16.msra.mxu0 0
      %1386 = vmatprep.subr.bf16.mxu0 0
      %1387 = vmatpush1.bf16.msra.mxu0 0
      %1388 = vmatprep.subr.bf16.mxu0 0
      %1389 = vmatpush1.bf16.msra.mxu0 0
      %1390 = vmatprep.subr.bf16.mxu0 0
      %1391 = vmatpush1.bf16.msra.mxu0 0
      %1392 = vmatprep.subr.bf16.mxu0 0
      %1393 = vmatpush1.bf16.msra.mxu0 0
      %1394 = vmatprep.subr.bf16.mxu0 0
      %1395 = vmatpush1.bf16.msra.mxu0 0
      %1396 = vmatprep.subr.bf16.mxu0 0
      %1397 = vmatpush1.bf16.msra.mxu0 0
      %1398 = vmatprep.subr.bf16.mxu0 0
      %1399 = vmatpush1.bf16.msra.mxu0 0
      %1400 = vmatprep.mubr.bf16.mxu0 0
      %1401 = vmatmul.mubr.bf16.gmra.mrb[0].mxu0 %v1352
      %v1402 = vpop.f32.mrb[0].mxu0
      %v1403 = vadd.f32 0.0, %v1402
      %v1404 = vpop.f32.mrb[0].mxu0
      %v1405 = vpop.f32.mrb[0].mxu0
      %v1406 = vadd.f32 0.0, %v1405
      %v1407 = vpop.f32.mrb[0].mxu0
      %1408 = vmatprep.mubr.bf16.mxu0 0
      %1409 = vmatmul.mubr.bf16.gmra.mrb[0].mxu0 %v1353
      %v1410 = vpop.f32.mrb[0].mxu0
      %v1411 = vadd.f32 0.0, %v1410
      %v1412 = vpop.f32.mrb[0].mxu0
      %v1413 = vpop.f32.mrb[0].mxu0
      %v1414 = vadd.f32 0.0, %v1413
      %v1415 = vpop.f32.mrb[0].mxu0
      %1416 = vmatprep.mubr.bf16.mxu0 0
      %1417 = vmatmul.mubr.bf16.gmra.mrb[0].mxu0 %v1354
      %v1418 = vpop.f32.mrb[0].mxu0
      %v1419 = vadd.f32 0.0, %v1418
      %v1420 = vpop.f32.mrb[0].mxu0
      %v1421 = vpop.f32.mrb[0].mxu0
      %v1422 = vadd.f32 0.0, %v1421
      %v1423 = vpop.f32.mrb[0].mxu0
      %1424 = vmatprep.mubr.bf16.mxu0 0
      %1425 = vmatmul.mubr.bf16.gmra.mrb[0].mxu0 %v1355
      %v1426 = vpop.f32.mrb[0].mxu0
      %v1427 = vadd.f32 0.0, %v1426
      %v1428 = vpop.f32.mrb[0].mxu0
      %v1429 = vpop.f32.mrb[0].mxu0
      %v1430 = vadd.f32 0.0, %v1429
      %v1431 = vpop.f32.mrb[0].mxu0
      %1432 = vmatprep.mubr.bf16.mxu0 0
      %1433 = vmatmul.mubr.bf16.gmra.mrb[0].mxu0 %v1356
      %v1434 = vpop.f32.mrb[0].mxu0
      %v1435 = vadd.f32 0.0, %v1434
      %v1436 = vpop.f32.mrb[0].mxu0
      %v1437 = vpop.f32.mrb[0].mxu0
      %v1438 = vadd.f32 0.0, %v1437
      %v1439 = vpop.f32.mrb[0].mxu0
      %1440 = vmatprep.mubr.bf16.mxu0 0
      %1441 = vmatmul.mubr.bf16.gmra.mrb[0].mxu0 %v1357
      %v1442 = vpop.f32.mrb[0].mxu0
      %v1443 = vadd.f32 0.0, %v1442
      %v1444 = vpop.f32.mrb[0].mxu0
      %v1445 = vpop.f32.mrb[0].mxu0
      %v1446 = vadd.f32 0.0, %v1445
      %v1447 = vpop.f32.mrb[0].mxu0
      %1448 = vmatprep.mubr.bf16.mxu0 0
      %1449 = vmatmul.mubr.bf16.gmra.mrb[0].mxu0 %v1358
      %v1450 = vpop.f32.mrb[0].mxu0
      %v1451 = vadd.f32 0.0, %v1450
      %v1452 = vpop.f32.mrb[0].mxu0
      %v1453 = vpop.f32.mrb[0].mxu0
      %v1454 = vadd.f32 0.0, %v1453
      %v1455 = vpop.f32.mrb[0].mxu0
      %1456 = vmatprep.mubr.bf16.mxu0 0
      %1457 = vmatmul.mubr.bf16.gmra.mrb[0].mxu0 %v1359
      %v1458 = vpop.f32.mrb[0].mxu0
      %v1459 = vadd.f32 0.0, %v1458
      %v1460 = vpop.f32.mrb[0].mxu0
      %v1461 = vpop.f32.mrb[0].mxu0
      %v1462 = vadd.f32 0.0, %v1461
      %v1463 = vpop.f32.mrb[0].mxu0
      %1464 = vdwg.mxu0
      %v1465 = vadd.f32 %v1336, %v1403
      %v1466 = vadd.f32 %v1337, %v1406
      %v1467 = vadd.f32 %v1338, %v1411
      %v1468 = vadd.f32 %v1339, %v1414
      %v1469 = vadd.f32 %v1340, %v1419
      %v1470 = vadd.f32 %v1341, %v1422
      %v1471 = vadd.f32 %v1342, %v1427
      %v1472 = vadd.f32 %v1343, %v1430
      %v1473 = vadd.f32 %v1344, %v1435
      %v1474 = vadd.f32 %v1345, %v1438
      %v1475 = vadd.f32 %v1346, %v1443
      %v1476 = vadd.f32 %v1347, %v1446
      %v1477 = vadd.f32 %v1348, %v1451
      %v1478 = vadd.f32 %v1349, %v1454
      %v1479 = vadd.f32 %v1350, %v1459
      %v1480 = vadd.f32 %v1351, %v1462
      %1481 = vst.msk [vmem:[#allocation4] sm:$0xff] %vm637, %v1465
      %1482 = vst.msk [vmem:[#allocation4 + $0x8] sm:$0xff] %vm637, %v1466
      %1483 = vst.msk [vmem:[#allocation4 + $0x10] sm:$0xff] %vm637, %v1467
      %1484 = vst.msk [vmem:[#allocation4 + $0x18] sm:$0xff] %vm637, %v1468
      %1485 = vst.msk [vmem:[#allocation4 + $0x20] sm:$0xff] %vm637, %v1469
      %1486 = vst.msk [vmem:[#allocation4 + $0x28] sm:$0xff] %vm637, %v1470
      %1487 = vst.msk [vmem:[#allocation4 + $0x30] sm:$0xff] %vm637, %v1471
      %1488 = vst.msk [vmem:[#allocation4 + $0x38] sm:$0xff] %vm637, %v1472
      %1489 = vst.msk [vmem:[#allocation4 + $0x40] sm:$0xff] %vm637, %v1473
      %1490 = vst.msk [vmem:[#allocation4 + $0x48] sm:$0xff] %vm637, %v1474
      %1491 = vst.msk [vmem:[#allocation4 + $0x50] sm:$0xff] %vm637, %v1475
      %1492 = vst.msk [vmem:[#allocation4 + $0x58] sm:$0xff] %vm637, %v1476
      %1493 = vst.msk [vmem:[#allocation4 + $0x60] sm:$0xff] %vm637, %v1477
      %1494 = vst.msk [vmem:[#allocation4 + $0x68] sm:$0xff] %vm637, %v1478
      %1495 = vst.msk [vmem:[#allocation4 + $0x70] sm:$0xff] %vm637, %v1479
      %1496 = vst.msk [vmem:[#allocation4 + $0x78] sm:$0xff] %vm637, %v1480
      %1497 = vst.msk [vmem:[#allocation2] sm:$0xff] %vm1223, %v951
      %1498 = vst.msk [vmem:[#allocation2 + $0x8] sm:$0xff] %vm1223, %v952
      %1499 = vst.msk [vmem:[#allocation2 + $0x10] sm:$0xff] %vm1223, %v953
      %1500 = vst.msk [vmem:[#allocation2 + $0x18] sm:$0xff] %vm1223, %v954
      %1501 = vst.msk [vmem:[#allocation2 + $0x20] sm:$0xff] %vm1223, %v955
      %1502 = vst.msk [vmem:[#allocation2 + $0x28] sm:$0xff] %vm1223, %v956
      %1503 = vst.msk [vmem:[#allocation2 + $0x30] sm:$0xff] %vm1223, %v957
      %1504 = vst.msk [vmem:[#allocation2 + $0x38] sm:$0xff] %vm1223, %v958
      %1505 = vst.msk [vmem:[#allocation2 + $0x40] sm:$0xff] %vm1223, %v959
      %1506 = vst.msk [vmem:[#allocation2 + $0x48] sm:$0xff] %vm1223, %v960
      %1507 = vst.msk [vmem:[#allocation2 + $0x50] sm:$0xff] %vm1223, %v961
      %1508 = vst.msk [vmem:[#allocation2 + $0x58] sm:$0xff] %vm1223, %v962
      %1509 = vst.msk [vmem:[#allocation2 + $0x60] sm:$0xff] %vm1223, %v963
      %1510 = vst.msk [vmem:[#allocation2 + $0x68] sm:$0xff] %vm1223, %v964
      %1511 = vst.msk [vmem:[#allocation2 + $0x70] sm:$0xff] %vm1223, %v965
      %1512 = vst.msk [vmem:[#allocation2 + $0x78] sm:$0xff] %vm1223, %v966
      %p1513 = scmp.eq.s32.totalorder %s24, 1
      // Predicated region
      $region49: #{tpu_custom_call.1} parent=43 // pred_check
        %p1514 = pneg %p1513
      $region50: #{tpu_custom_call.1} parent=43 // pred_check_branch
        %1516 = sbr.rel (%p1514) target = $region52
      $region51: #{tpu_custom_call.1} parent=43 // pred_region
        %v1517 = vld [vmem:[#allocation3] sm:$0xff]
        %v1518 = vld [vmem:[#allocation3 + $0x8] sm:$0xff]
        %v1519 = vld [vmem:[#allocation3 + $0x10] sm:$0xff]
        %v1520 = vld [vmem:[#allocation3 + $0x18] sm:$0xff]
        %v1521 = vld [vmem:[#allocation3 + $0x20] sm:$0xff]
        %v1522 = vld [vmem:[#allocation3 + $0x28] sm:$0xff]
        %v1523 = vld [vmem:[#allocation3 + $0x30] sm:$0xff]
        %v1524 = vld [vmem:[#allocation3 + $0x38] sm:$0xff]
        %v1525 = vld [vmem:[#allocation3 + $0x40] sm:$0xff]
        %v1526 = vld [vmem:[#allocation3 + $0x48] sm:$0xff]
        %v1527 = vld [vmem:[#allocation3 + $0x50] sm:$0xff]
        %v1528 = vld [vmem:[#allocation3 + $0x58] sm:$0xff]
        %v1529 = vld [vmem:[#allocation3 + $0x60] sm:$0xff]
        %v1530 = vld [vmem:[#allocation3 + $0x68] sm:$0xff]
        %v1531 = vld [vmem:[#allocation3 + $0x70] sm:$0xff]
        %v1532 = vld [vmem:[#allocation3 + $0x78] sm:$0xff]
        %v1533 = vrcp.pop %v1517
        %v1534 = vrcp.pop %v1518
        %v1535 = vrcp.pop %v1519
        %v1536 = vrcp.pop %v1520
        %v1537 = vrcp.pop %v1521
        %v1538 = vrcp.pop %v1522
        %v1539 = vrcp.pop %v1523
        %v1540 = vrcp.pop %v1524
        %v1541 = vrcp.pop %v1525
        %v1542 = vrcp.pop %v1526
        %v1543 = vrcp.pop %v1527
        %v1544 = vrcp.pop %v1528
        %v1545 = vrcp.pop %v1529
        %v1546 = vrcp.pop %v1530
        %v1547 = vrcp.pop %v1531
        %v1548 = vrcp.pop %v1532
        %v1549 = vld [vmem:[%s312] sm:$0xff]
        %v1550 = vld [vmem:[%s312 + $0x8] sm:$0xff]
        %v1551 = vld [vmem:[%s312 + $0x10] sm:$0xff]
        %v1552 = vld [vmem:[%s312 + $0x18] sm:$0xff]
        %v1553 = vld [vmem:[%s312 + $0x20] sm:$0xff]
        %v1554 = vld [vmem:[%s312 + $0x28] sm:$0xff]
        %v1555 = vld [vmem:[%s312 + $0x30] sm:$0xff]
        %v1556 = vld [vmem:[%s312 + $0x38] sm:$0xff]
        %v1557 = vld [vmem:[%s312 + $0x40] sm:$0xff]
        %v1558 = vld [vmem:[%s312 + $0x48] sm:$0xff]
        %v1559 = vld [vmem:[%s312 + $0x50] sm:$0xff]
        %v1560 = vld [vmem:[%s312 + $0x58] sm:$0xff]
        %v1561 = vld [vmem:[%s312 + $0x60] sm:$0xff]
        %v1562 = vld [vmem:[%s312 + $0x68] sm:$0xff]
        %v1563 = vld [vmem:[%s312 + $0x70] sm:$0xff]
        %v1564 = vld [vmem:[%s312 + $0x78] sm:$0xff]
        %v1565 = vld [vmem:[#allocation4] sm:$0xff]
        %v1566 = vld [vmem:[#allocation4 + $0x8] sm:$0xff]
        %v1567 = vld [vmem:[#allocation4 + $0x10] sm:$0xff]
        %v1568 = vld [vmem:[#allocation4 + $0x18] sm:$0xff]
        %v1569 = vld [vmem:[#allocation4 + $0x20] sm:$0xff]
        %v1570 = vld [vmem:[#allocation4 + $0x28] sm:$0xff]
        %v1571 = vld [vmem:[#allocation4 + $0x30] sm:$0xff]
        %v1572 = vld [vmem:[#allocation4 + $0x38] sm:$0xff]
        %v1573 = vld [vmem:[#allocation4 + $0x40] sm:$0xff]
        %v1574 = vld [vmem:[#allocation4 + $0x48] sm:$0xff]
        %v1575 = vld [vmem:[#allocation4 + $0x50] sm:$0xff]
        %v1576 = vld [vmem:[#allocation4 + $0x58] sm:$0xff]
        %v1577 = vld [vmem:[#allocation4 + $0x60] sm:$0xff]
        %v1578 = vld [vmem:[#allocation4 + $0x68] sm:$0xff]
        %v1579 = vld [vmem:[#allocation4 + $0x70] sm:$0xff]
        %v1580 = vld [vmem:[#allocation4 + $0x78] sm:$0xff]
        %1582 = vset.pattern.permute.xlu0 0
        %1583 = vperm.xlu0 %1582, %v1533
        %v1584 = vpop.permute.xlu0 %1583
        %1587 = vset.pattern.permute.xlu0 0
        %1588 = vperm.xlu0 %1587, %v1534
        %v1589 = vpop.permute.xlu0 %1588
        %1592 = vset.pattern.permute.xlu0 0
        %1593 = vperm.xlu0 %1592, %v1535
        %v1594 = vpop.permute.xlu0 %1593
        %1597 = vset.pattern.permute.xlu0 0
        %1598 = vperm.xlu0 %1597, %v1536
        %v1599 = vpop.permute.xlu0 %1598
        %1602 = vset.pattern.permute.xlu0 0
        %1603 = vperm.xlu0 %1602, %v1537
        %v1604 = vpop.permute.xlu0 %1603
        %1607 = vset.pattern.permute.xlu0 0
        %1608 = vperm.xlu0 %1607, %v1538
        %v1609 = vpop.permute.xlu0 %1608
        %1612 = vset.pattern.permute.xlu0 0
        %1613 = vperm.xlu0 %1612, %v1539
        %v1614 = vpop.permute.xlu0 %1613
        %1617 = vset.pattern.permute.xlu0 0
        %1618 = vperm.xlu0 %1617, %v1540
        %v1619 = vpop.permute.xlu0 %1618
        %1622 = vset.pattern.permute.xlu0 0
        %1623 = vperm.xlu0 %1622, %v1541
        %v1624 = vpop.permute.xlu0 %1623
        %1627 = vset.pattern.permute.xlu0 0
        %1628 = vperm.xlu0 %1627, %v1542
        %v1629 = vpop.permute.xlu0 %1628
        %1632 = vset.pattern.permute.xlu0 0
        %1633 = vperm.xlu0 %1632, %v1543
        %v1634 = vpop.permute.xlu0 %1633
        %1637 = vset.pattern.permute.xlu0 0
        %1638 = vperm.xlu0 %1637, %v1544
        %v1639 = vpop.permute.xlu0 %1638
        %1642 = vset.pattern.permute.xlu0 0
        %1643 = vperm.xlu0 %1642, %v1545
        %v1644 = vpop.permute.xlu0 %1643
        %1647 = vset.pattern.permute.xlu0 0
        %1648 = vperm.xlu0 %1647, %v1546
        %v1649 = vpop.permute.xlu0 %1648
        %1652 = vset.pattern.permute.xlu0 0
        %1653 = vperm.xlu0 %1652, %v1547
        %v1654 = vpop.permute.xlu0 %1653
        %1657 = vset.pattern.permute.xlu0 0
        %1658 = vperm.xlu0 %1657, %v1548
        %v1659 = vpop.permute.xlu0 %1658
        %v1661 = vmul.f32 %v1565, %v1584
        %v1662 = vmul.f32 %v1566, %v1589
        %v1663 = vmul.f32 %v1567, %v1594
        %v1664 = vmul.f32 %v1568, %v1599
        %v1665 = vmul.f32 %v1569, %v1604
        %v1666 = vmul.f32 %v1570, %v1609
        %v1667 = vmul.f32 %v1571, %v1614
        %v1668 = vmul.f32 %v1572, %v1619
        %v1669 = vmul.f32 %v1573, %v1624
        %v1670 = vmul.f32 %v1574, %v1629
        %v1671 = vmul.f32 %v1575, %v1634
        %v1672 = vmul.f32 %v1576, %v1639
        %v1673 = vmul.f32 %v1577, %v1644
        %v1674 = vmul.f32 %v1578, %v1649
        %v1675 = vmul.f32 %v1579, %v1654
        %v1676 = vmul.f32 %v1580, %v1659
        %v1677 = vadd.f32 %v1549, %v1661
        %v1678 = vadd.f32 %v1550, %v1662
        %v1679 = vadd.f32 %v1551, %v1663
        %v1680 = vadd.f32 %v1552, %v1664
        %v1681 = vadd.f32 %v1553, %v1665
        %v1682 = vadd.f32 %v1554, %v1666
        %v1683 = vadd.f32 %v1555, %v1667
        %v1684 = vadd.f32 %v1556, %v1668
        %v1685 = vadd.f32 %v1557, %v1669
        %v1686 = vadd.f32 %v1558, %v1670
        %v1687 = vadd.f32 %v1559, %v1671
        %v1688 = vadd.f32 %v1560, %v1672
        %v1689 = vadd.f32 %v1561, %v1673
        %v1690 = vadd.f32 %v1562, %v1674
        %v1691 = vadd.f32 %v1563, %v1675
        %v1692 = vadd.f32 %v1564, %v1676
        %1693 = vst.msk [vmem:[%s332] sm:$0xff] %vm637, %v1677
        %1694 = vst.msk [vmem:[%s332 + $0x8] sm:$0xff] %vm637, %v1678
        %1695 = vst.msk [vmem:[%s332 + $0x10] sm:$0xff] %vm637, %v1679
        %1696 = vst.msk [vmem:[%s332 + $0x18] sm:$0xff] %vm637, %v1680
        %1697 = vst.msk [vmem:[%s332 + $0x20] sm:$0xff] %vm637, %v1681
        %1698 = vst.msk [vmem:[%s332 + $0x28] sm:$0xff] %vm637, %v1682
        %1699 = vst.msk [vmem:[%s332 + $0x30] sm:$0xff] %vm637, %v1683
        %1700 = vst.msk [vmem:[%s332 + $0x38] sm:$0xff] %vm637, %v1684
        %1701 = vst.msk [vmem:[%s332 + $0x40] sm:$0xff] %vm637, %v1685
        %1702 = vst.msk [vmem:[%s332 + $0x48] sm:$0xff] %vm637, %v1686
        %1703 = vst.msk [vmem:[%s332 + $0x50] sm:$0xff] %vm637, %v1687
        %1704 = vst.msk [vmem:[%s332 + $0x58] sm:$0xff] %vm637, %v1688
        %1705 = vst.msk [vmem:[%s332 + $0x60] sm:$0xff] %vm637, %v1689
        %1706 = vst.msk [vmem:[%s332 + $0x68] sm:$0xff] %vm637, %v1690
        %1707 = vst.msk [vmem:[%s332 + $0x70] sm:$0xff] %vm637, %v1691
        %1708 = vst.msk [vmem:[%s332 + $0x78] sm:$0xff] %vm637, %v1692
      $region52: #{tpu_custom_call.1} parent=43 // pred_fallthru
        _
      %s1709 = smul.u32 16, %s23
      %p1710 = scmp.lt.s32.totalorder %s22, 1
      %s1711 = scalar_select %p1710, %s22, 1
      %p1712 = scmp.lt.s32.totalorder %s1709, 31
      %s1713 = scalar_select %p1712, %s1709, 31
      %s1714 = smul.addr %s1711, 32
      %s1715 = sadd.s32 %s1713, %s1714
      %s1716 = smul.addr %s1715, 8
      %s1717 = scalar_lea.vmem %s6, %s1716
      // Predicated region
      $region53: #{tpu_custom_call.1} parent=43 // pred_check
        %p1718 = pneg %p196
      $region54: #{tpu_custom_call.1} parent=43 // pred_check_branch
        %1720 = sbr.rel (%p1718) target = $region56
      $region55: #{tpu_custom_call.1} parent=43 // pred_region
        %s1721 = smul.u32 16, %s23
      $region56: #{tpu_custom_call.1} parent=43 // pred_fallthru
        _
    $region44: #{tpu_custom_call.1} parent=5 // pred_fallthru
      _
    %p1722 = scmp.le.s32.totalorder 2, %s12
    // Predicated region
    $region57: #{tpu_custom_call.1} parent=5 // pred_check
      %p1723 = pneg %p1722
    $region58: #{tpu_custom_call.1} parent=5 // pred_check_branch
      %1725 = sbr.rel (%p1723) target = $region60
    $region59: #{tpu_custom_call.1} parent=5 // pred_region
      %s1726 = ssub.s32 %s12, 2
      // Predicated region
      $region61: #{tpu_custom_call.1} parent=59 // pred_check
        %p1727 = pneg %p202
      $region62: #{tpu_custom_call.1} parent=59 // pred_check_branch
        %1729 = sbr.rel (%p1727) target = $region64
      $region63: #{tpu_custom_call.1} parent=59 // pred_region
        %s1730 = smul.u32 16, %s26
        %p1731 = scmp.lt.s32.totalorder %s25, 1
        %s1732 = scalar_select %p1731, %s25, 1
        %p1733 = scmp.lt.s32.totalorder %s1730, 31
        %s1734 = scalar_select %p1733, %s1730, 31
        %s1735 = smul.addr %s1732, 32
        %s1736 = sadd.s32 %s1734, %s1735
        %s1737 = smul.addr %s1736, 8
        %s1738 = scalar_lea.vmem %s6, %s1737
      $region64: #{tpu_custom_call.1} parent=59 // pred_fallthru
        _
    $region60: #{tpu_custom_call.1} parent=5 // pred_fallthru
      _
  $region6: #{tpu_custom_call.1} parent=0 // loop_footer
    %s16 = sadd.s32 1, %s12
  $region7: #{tpu_custom_call.1} parent=0 // loop_footer_branch
    %11 = sbr.rel target = $region3
  $region8: #{tpu_custom_call.1} parent=0 // loop_exit
    _

</llo_original>
